<compile_context>
chip_gen: v6e
topology: v6e:2x2x1
jax: 0.10.0
libtpu: 0.0.40
codegen_flags: <defaults>
</compile_context>

<pallas_src>
import math
import functools

import jax
import jax.numpy as jnp
from jax.experimental import pallas as pl
from jax.experimental.pallas import tpu as pltpu

# ---- model hyper-parameters (small, consistent with the module's forward) ----
B = 2            # batch
S = 8            # sequence length
H = 32           # hidden_dim
F = 64           # FFN intermediate dim
NH = 4           # attention heads
DH = H // NH     # per-head dim
C = 3            # num_classes
VOCAB = 50
TYPES = 2
LN_EPS = 1e-12
OUT_PAD = 128    # lane-dense padded classifier width

# ---- weight slab layout: shape (W_ROWS, W_COLS); all sub-weights left/top aligned ----
COL_WQKV = 0            # width 3*H   (wq|wk|wv, rows 0:H)
COL_WO = 3 * H          # width H     (rows 0:H)
COL_W1 = 4 * H          # width F     (rows 0:H)
COL_W2 = 4 * H + F      # width H     (rows 0:F)
COL_WP = 5 * H + F      # width H     (rows 0:H)
COL_WFC = 6 * H + F     # width OUT_PAD (rows 0:H)
W_COLS = 6 * H + F + OUT_PAD   # 384
W_ROWS = F                      # 64

# ---- bias/LN slab layout: shape (12, 128); each row holds one vector, left-aligned ----
(R_LNE_G, R_LNE_B, R_BQKV, R_BO, R_LN1_G, R_LN1_B,
 R_B1, R_B2, R_LN2_G, R_LN2_B, R_BP, R_BFC) = range(12)
N_BIAS_ROWS = 12


def _layer_norm(x, g, b):
    mu = jnp.mean(x, axis=-1, keepdims=True)
    var = jnp.mean((x - mu) ** 2, axis=-1, keepdims=True)
    return (x - mu) * jax.lax.rsqrt(var + LN_EPS) * g + b


def _gelu(x):
    # TODO(synk): HF BERT default is exact erf-GELU; tanh approximation kept here.
    return 0.5 * x * (1.0 + jnp.tanh(0.7978845608028654 * (x + 0.044715 * x * x * x)))


def _bert_classifier_kernel(idt_ref, maskf_ref, emb_ref, w_ref, bias_ref, out_ref):
    ids = idt_ref[0]                       # (B, S) int32
    tti = idt_ref[1]                       # (B, S) int32
    maskf = maskf_ref[...]                 # (B, S) f32, 1.0 keep / 0.0 pad
    emb = emb_ref[...]                     # (VOCAB+S+TYPES, H)
    w = w_ref[...]                         # (W_ROWS, W_COLS)
    bias = bias_ref[...]                   # (12, 128)

    def brow(r, width):                    # static slice -> (1, width)
        return bias[r:r + 1, 0:width]

    # ---- embedding lookup inside the kernel ----
    # word embedding via one-hot matmul (in-kernel gather)
    onehot = (jax.lax.broadcasted_iota(jnp.int32, (B, S, VOCAB), 2)
              == ids[:, :, None]).astype(jnp.float32)                # (B,S,V)
    word = jnp.einsum('bsv,vh->bsh', onehot, emb[0:VOCAB, :],
                      preferred_element_type=jnp.float32)            # (B,S,H)
    pos = emb[VOCAB:VOCAB + S, :]                                    # (S,H)
    typ0 = emb[VOCAB + S:VOCAB + S + 1, :]                           # (1,H)
    typ1 = emb[VOCAB + S + 1:VOCAB + S + 2, :]                       # (1,H)
    typ = jnp.where(tti[:, :, None] == 1, typ1[None, :, :], typ0[None, :, :])
    x = (word + pos[None, :, :] + typ).reshape(B * S, H)             # (B*S, H)

    # ---- embedding LayerNorm ----
    hid = _layer_norm(x, brow(R_LNE_G, H), brow(R_LNE_B, H))

    # ---- fused QKV projection: one (B*S,H)x(H,3H) matmul ----
    qkv = jnp.dot(hid, w[0:H, COL_WQKV:COL_WQKV + 3 * H],
                  preferred_element_type=jnp.float32) + brow(R_BQKV, 3 * H)
    q = qkv[:, 0:H].reshape(B, S, H)
    k = qkv[:, H:2 * H].reshape(B, S, H)
    v = qkv[:, 2 * H:3 * H].reshape(B, S, H)

    # ---- multi-head self-attention ----
    add_mask = jnp.broadcast_to(((1.0 - maskf) * -1e9)[:, None, :], (B, S, S))
    scale = 1.0 / math.sqrt(DH)
    ctx_heads = []
    for hh in range(NH):                   # static loop; DH=8 per head
        sl = slice(hh * DH, (hh + 1) * DH)
        scores = jnp.einsum('bqd,bkd->bqk', q[:, :, sl], k[:, :, sl],
                            preferred_element_type=jnp.float32) * scale + add_mask
        m = jnp.max(scores, axis=-1, keepdims=True)
        e = jnp.exp(scores - m)
        p = e * pl.reciprocal(jnp.sum(e, axis=-1, keepdims=True), approx=True)
        ctx_heads.append(jnp.einsum('bqk,bkd->bqd', p, v[:, :, sl],
                                    preferred_element_type=jnp.float32))
    # single output projection with the full wo instead of 4 per-head matmuls
    ctx = jnp.concatenate(ctx_heads, axis=-1).reshape(B * S, H)
    attn = jnp.dot(ctx, w[0:H, COL_WO:COL_WO + H],
                   preferred_element_type=jnp.float32) + brow(R_BO, H)

    h1 = _layer_norm(hid + attn, brow(R_LN1_G, H), brow(R_LN1_B, H))

    # ---- feed-forward ----
    ff = jnp.dot(h1, w[0:H, COL_W1:COL_W1 + F],
                 preferred_element_type=jnp.float32) + brow(R_B1, F)
    ff = _gelu(ff)
    ff = jnp.dot(ff, w[0:F, COL_W2:COL_W2 + H],
                 preferred_element_type=jnp.float32) + brow(R_B2, H)
    h2 = _layer_norm(h1 + ff, brow(R_LN2_G, H), brow(R_LN2_B, H))

    # ---- pooler: tanh(W * CLS + b)  (second output of BERT return_dict=False) ----
    cls = h2.reshape(B, S, H)[:, 0, :]                               # (B,H)
    pooled = jnp.tanh(jnp.dot(cls, w[0:H, COL_WP:COL_WP + H],
                              preferred_element_type=jnp.float32) + brow(R_BP, H))

    # ---- dropout(p=0.3): identity at inference ----
    # TODO(synk): training-mode dropout would need pltpu.prng_random_bits masking.

    # ---- final classifier, lane-dense padded to 128 (sliced outside kernel) ----
    out_ref[...] = (jnp.dot(pooled, w[0:H, COL_WFC:COL_WFC + OUT_PAD],
                            preferred_element_type=jnp.float32)
                    + brow(R_BFC, OUT_PAD))


def init_params(key):
    def nrm(k, shape, std=0.02):
        return (std * jax.random.normal(k, shape)).astype(jnp.float32)

    ks = jax.random.split(key, 16)
    p = dict(
        word_emb=nrm(ks[0], (VOCAB, H)),
        pos_emb=nrm(ks[1], (S, H)),
        type_emb=nrm(ks[2], (TYPES, H)),
        lne_g=jnp.ones((1, H), jnp.float32), lne_b=jnp.zeros((1, H), jnp.float32),
        wq=nrm(ks[3], (H, H)), bq=jnp.zeros((1, H), jnp.float32),
        wk=nrm(ks[4], (H, H)), bk=jnp.zeros((1, H), jnp.float32),
        wv=nrm(ks[5], (H, H)), bv=jnp.zeros((1, H), jnp.float32),
        wo=nrm(ks[6], (H, H)), bo=jnp.zeros((1, H), jnp.float32),
        ln1_g=jnp.ones((1, H), jnp.float32), ln1_b=jnp.zeros((1, H), jnp.float32),
        w1=nrm(ks[7], (H, F)), b1=jnp.zeros((1, F), jnp.float32),
        w2=nrm(ks[8], (F, H)), b2=jnp.zeros((1, H), jnp.float32),
        ln2_g=jnp.ones((1, H), jnp.float32), ln2_b=jnp.zeros((1, H), jnp.float32),
        wp=nrm(ks[9], (H, H)), bp=jnp.zeros((1, H), jnp.float32),
        wfc=nrm(ks[10], (H, C)), bfc=jnp.zeros((1, C), jnp.float32),
    )
    return p


def pack_params(p):
    """Pack the 24 small parameter arrays into 3 slabs (done once, outside jit)."""
    def rows_to(wm, rows=W_ROWS):
        return jnp.pad(wm, ((0, rows - wm.shape[0]), (0, 0)))

    def lane128(v):
        return jnp.pad(v, ((0, 0), (0, 128 - v.shape[1])))

    wfc_pad = jnp.pad(p['wfc'], ((0, 0), (0, OUT_PAD - C)))
    w_slab = jnp.concatenate(
        [rows_to(p['wq']), rows_to(p['wk']), rows_to(p['wv']), rows_to(p['wo']),
         rows_to(p['w1']), rows_to(p['w2']), rows_to(p['wp']), rows_to(wfc_pad)],
        axis=1)                                                       # (64, 384)

    bias_slab = jnp.concatenate(
        [lane128(p['lne_g']), lane128(p['lne_b']),
         lane128(jnp.concatenate([p['bq'], p['bk'], p['bv']], axis=1)),
         lane128(p['bo']),
         lane128(p['ln1_g']), lane128(p['ln1_b']),
         lane128(p['b1']), lane128(p['b2']),
         lane128(p['ln2_g']), lane128(p['ln2_b']),
         lane128(p['bp']),
         lane128(jnp.pad(p['bfc'], ((0, 0), (0, OUT_PAD - C))))],
        axis=0)                                                       # (12, 128)

    emb_slab = jnp.concatenate([p['word_emb'], p['pos_emb'], p['type_emb']],
                               axis=0)                                # (60, 32)
    return {'emb': emb_slab, 'w': w_slab, 'bias': bias_slab}


@functools.partial(jax.jit, static_argnames=())
def simplified_improved_model(ids, mask, token_type_ids, packed):
    idt = jnp.stack([ids, token_type_ids]).astype(jnp.int32)          # (2, B, S)
    maskf = mask.astype(jnp.float32)

    vmem = pl.BlockSpec(memory_space=pltpu.MemorySpace.VMEM)
    logits_pad = pl.pallas_call(
        _bert_classifier_kernel,
        out_shape=jax.ShapeDtypeStruct((B, OUT_PAD), jnp.float32),
        in_specs=[vmem] * 5,
        out_specs=vmem,
    )(idt, maskf, packed['emb'], packed['w'], packed['bias'])
    return logits_pad[:, :C]                                          # (B, C)


if __name__ == "__main__":
    key = jax.random.PRNGKey(0)
    k_ids, k_params = jax.random.split(key)

    ids = jax.random.randint(k_ids, (B, S), 0, VOCAB, dtype=jnp.int32)
    mask = jnp.ones((B, S), dtype=jnp.int32).at[1, S - 2:].set(0)   # pad tail of sample 1
    token_type_ids = jnp.zeros((B, S), dtype=jnp.int32).at[:, S // 2:].set(1)

    params = init_params(k_params)
    packed = pack_params(params)         # one-time packing, outside the jitted path

    logits = simplified_improved_model(ids, mask, token_type_ids, packed)
    jax.block_until_ready(logits)
    assert logits.shape == (B, C) and logits.dtype == jnp.float32
    print("KERNEL_OK")
</pallas_src>

<mosaic_0001>
module attributes {stable_mosaic.version = 11 : i64} {
  func.func @_bert_classifier_kernel(%arg0: memref<2x2x8xi32, #tpu.memory_space<vmem>>, %arg1: memref<2x8xf32, #tpu.memory_space<vmem>>, %arg2: memref<60x32xf32, #tpu.memory_space<vmem>>, %arg3: memref<64x384xf32, #tpu.memory_space<vmem>>, %arg4: memref<12x128xf32, #tpu.memory_space<vmem>>, %arg5: memref<2x128xf32, #tpu.memory_space<vmem>>) attributes {dimension_semantics = [], scalar_prefetch = 0 : i64, scratch_operands = 0 : i64, tpu.core_type = #tpu.core_type<tc>} {
    %c0 = arith.constant 0 : index
    %c0_0 = arith.constant 0 : index
    %c0_1 = arith.constant 0 : index
    %0 = vector.load %arg0[%c0, %c0_0, %c0_1] : memref<2x2x8xi32, #tpu.memory_space<vmem>>, vector<1x2x8xi32>
    %1 = vector.shape_cast %0 : vector<1x2x8xi32> to vector<2x8xi32>
    %c1 = arith.constant 1 : index
    %c0_2 = arith.constant 0 : index
    %c0_3 = arith.constant 0 : index
    %2 = vector.load %arg0[%c1, %c0_2, %c0_3] : memref<2x2x8xi32, #tpu.memory_space<vmem>>, vector<1x2x8xi32>
    %3 = vector.shape_cast %2 : vector<1x2x8xi32> to vector<2x8xi32>
    %c0_4 = arith.constant 0 : index
    %c0_5 = arith.constant 0 : index
    %4 = vector.load %arg1[%c0_4, %c0_5] : memref<2x8xf32, #tpu.memory_space<vmem>>, vector<2x8xf32>
    %c0_6 = arith.constant 0 : index
    %c0_7 = arith.constant 0 : index
    %5 = vector.load %arg2[%c0_6, %c0_7] : memref<60x32xf32, #tpu.memory_space<vmem>>, vector<60x32xf32>
    %c0_8 = arith.constant 0 : index
    %c0_9 = arith.constant 0 : index
    %6 = vector.load %arg3[%c0_8, %c0_9] : memref<64x384xf32, #tpu.memory_space<vmem>>, vector<64x384xf32>
    %c0_10 = arith.constant 0 : index
    %c0_11 = arith.constant 0 : index
    %7 = vector.load %arg4[%c0_10, %c0_11] : memref<12x128xf32, #tpu.memory_space<vmem>>, vector<12x128xf32>
    %8 = tpu.iota {dimensions = array<i32: 2>} : vector<2x8x50xi32>
    %9 = vector.shape_cast %1 : vector<2x8xi32> to vector<2x8x1xi32>
    %10 = vector.broadcast %9 : vector<2x8x1xi32> to vector<2x8x50xi32>
    %11 = arith.cmpi eq, %8, %10 : vector<2x8x50xi32>
    %12 = arith.extui %11 : vector<2x8x50xi1> to vector<2x8x50xi32>
    %13 = arith.sitofp %12 : vector<2x8x50xi32> to vector<2x8x50xf32>
    %14 = vector.extract_strided_slice %5 {offsets = [0, 0], sizes = [50, 32], strides = [1, 1]} : vector<60x32xf32> to vector<50x32xf32>
    "tpu.trace_start"() <{level = 10 : i32, message = "bsv,vh->bsh"}> : () -> ()
    %cst = arith.constant dense<0.000000e+00> : vector<2x8x32xf32>
    %15 = tpu.matmul %13, %14, %cst {dimension_numbers = #tpu.dot_dimension_numbers<[2], [0], [0, 1], [1], [0, 0, 0, 1, 1, 1], [], []>} : vector<2x8x50xf32>, vector<50x32xf32>, vector<2x8x32xf32> -> vector<2x8x32xf32>
    "tpu.trace_stop"() : () -> ()
    %16 = vector.extract_strided_slice %5 {offsets = [50, 0], sizes = [8, 32], strides = [1, 1]} : vector<60x32xf32> to vector<8x32xf32>
    %17 = vector.extract_strided_slice %5 {offsets = [58, 0], sizes = [1, 32], strides = [1, 1]} : vector<60x32xf32> to vector<1x32xf32>
    %18 = vector.extract_strided_slice %5 {offsets = [59, 0], sizes = [1, 32], strides = [1, 1]} : vector<60x32xf32> to vector<1x32xf32>
    %19 = vector.shape_cast %3 : vector<2x8xi32> to vector<2x8x1xi32>
    %c1_i32 = arith.constant 1 : i32
    %20 = vector.broadcast %c1_i32 : i32 to vector<2x8x1xi32>
    %21 = arith.cmpi eq, %19, %20 : vector<2x8x1xi32>
    %22 = vector.shape_cast %18 : vector<1x32xf32> to vector<1x1x32xf32>
    %23 = vector.shape_cast %17 : vector<1x32xf32> to vector<1x1x32xf32>
    %24 = vector.shape_cast %21 : vector<2x8x1xi1> to vector<2x8x1xi1>
    %25 = vector.broadcast %24 : vector<2x8x1xi1> to vector<2x8x32xi1>
    %26 = vector.shape_cast %22 : vector<1x1x32xf32> to vector<1x1x32xf32>
    %27 = vector.broadcast %26 : vector<1x1x32xf32> to vector<2x8x32xf32>
    %28 = vector.shape_cast %23 : vector<1x1x32xf32> to vector<1x1x32xf32>
    %29 = vector.broadcast %28 : vector<1x1x32xf32> to vector<2x8x32xf32>
    %30 = arith.select %25, %27, %29 : vector<2x8x32xi1>, vector<2x8x32xf32>
    %31 = vector.shape_cast %16 : vector<8x32xf32> to vector<1x8x32xf32>
    %32 = vector.broadcast %31 : vector<1x8x32xf32> to vector<2x8x32xf32>
    %33 = arith.addf %15, %32 : vector<2x8x32xf32>
    %34 = arith.addf %33, %30 : vector<2x8x32xf32>
    %35 = vector.shape_cast %34 : vector<2x8x32xf32> to vector<16x32xf32>
    %36 = vector.extract_strided_slice %7 {offsets = [0, 0], sizes = [1, 32], strides = [1, 1]} : vector<12x128xf32> to vector<1x32xf32>
    %37 = vector.extract_strided_slice %7 {offsets = [1, 0], sizes = [1, 32], strides = [1, 1]} : vector<12x128xf32> to vector<1x32xf32>
    %cst_12 = arith.constant dense<0.000000e+00> : vector<16xf32>
    %38 = vector.multi_reduction <add>, %35, %cst_12 [1] : vector<16x32xf32> to vector<16xf32>
    %39 = vector.shape_cast %38 : vector<16xf32> to vector<16x1xf32>
    %cst_13 = arith.constant 3.200000e+01 : f32
    %40 = vector.broadcast %cst_13 : f32 to vector<16x1xf32>
    %41 = arith.divf %39, %40 : vector<16x1xf32>
    %42 = vector.broadcast %41 : vector<16x1xf32> to vector<16x32xf32>
    %43 = arith.subf %35, %42 : vector<16x32xf32>
    %44 = arith.mulf %43, %43 : vector<16x32xf32>
    %cst_14 = arith.constant dense<0.000000e+00> : vector<16xf32>
    %45 = vector.multi_reduction <add>, %44, %cst_14 [1] : vector<16x32xf32> to vector<16xf32>
    %46 = vector.shape_cast %45 : vector<16xf32> to vector<16x1xf32>
    %cst_15 = arith.constant 3.200000e+01 : f32
    %47 = vector.broadcast %cst_15 : f32 to vector<16x1xf32>
    %48 = arith.divf %46, %47 : vector<16x1xf32>
    %49 = vector.broadcast %41 : vector<16x1xf32> to vector<16x32xf32>
    %50 = arith.subf %35, %49 : vector<16x32xf32>
    %cst_16 = arith.constant 9.99999996E-13 : f32
    %51 = vector.broadcast %cst_16 : f32 to vector<16x1xf32>
    %52 = arith.addf %48, %51 : vector<16x1xf32>
    %53 = math.rsqrt %52 : vector<16x1xf32>
    %54 = vector.broadcast %53 : vector<16x1xf32> to vector<16x32xf32>
    %55 = arith.mulf %50, %54 : vector<16x32xf32>
    %56 = vector.broadcast %36 : vector<1x32xf32> to vector<16x32xf32>
    %57 = arith.mulf %55, %56 : vector<16x32xf32>
    %58 = vector.broadcast %37 : vector<1x32xf32> to vector<16x32xf32>
    %59 = arith.addf %57, %58 : vector<16x32xf32>
    %60 = vector.extract_strided_slice %6 {offsets = [0, 0], sizes = [32, 96], strides = [1, 1]} : vector<64x384xf32> to vector<32x96xf32>
    %cst_17 = arith.constant dense<0.000000e+00> : vector<16x96xf32>
    %61 = tpu.matmul %59, %60, %cst_17 {dimension_numbers = #tpu.dot_dimension_numbers<[1], [0], [0], [1], [0, 0, 1, 1], [], []>} : vector<16x32xf32>, vector<32x96xf32>, vector<16x96xf32> -> vector<16x96xf32>
    %62 = vector.extract_strided_slice %7 {offsets = [2, 0], sizes = [1, 96], strides = [1, 1]} : vector<12x128xf32> to vector<1x96xf32>
    %63 = vector.broadcast %62 : vector<1x96xf32> to vector<16x96xf32>
    %64 = arith.addf %61, %63 : vector<16x96xf32>
    %65 = vector.extract_strided_slice %64 {offsets = [0, 0], sizes = [16, 32], strides = [1, 1]} : vector<16x96xf32> to vector<16x32xf32>
    %66 = vector.shape_cast %65 : vector<16x32xf32> to vector<2x8x32xf32>
    %67 = vector.extract_strided_slice %64 {offsets = [0, 32], sizes = [16, 32], strides = [1, 1]} : vector<16x96xf32> to vector<16x32xf32>
    %68 = vector.shape_cast %67 : vector<16x32xf32> to vector<2x8x32xf32>
    %69 = vector.extract_strided_slice %64 {offsets = [0, 64], sizes = [16, 32], strides = [1, 1]} : vector<16x96xf32> to vector<16x32xf32>
    %70 = vector.shape_cast %69 : vector<16x32xf32> to vector<2x8x32xf32>
    %cst_18 = arith.constant 1.000000e+00 : f32
    %71 = vector.broadcast %cst_18 : f32 to vector<2x8xf32>
    %72 = arith.subf %71, %4 : vector<2x8xf32>
    %cst_19 = arith.constant -1.000000e+09 : f32
    %73 = vector.broadcast %cst_19 : f32 to vector<2x8xf32>
    %74 = arith.mulf %72, %73 : vector<2x8xf32>
    %75 = vector.shape_cast %74 : vector<2x8xf32> to vector<2x1x8xf32>
    %76 = vector.shape_cast %75 : vector<2x1x8xf32> to vector<2x1x8xf32>
    %77 = vector.broadcast %76 : vector<2x1x8xf32> to vector<2x8x8xf32>
    %78 = vector.extract_strided_slice %66 {offsets = [0, 0, 0], sizes = [2, 8, 8], strides = [1, 1, 1]} : vector<2x8x32xf32> to vector<2x8x8xf32>
    %79 = vector.extract_strided_slice %68 {offsets = [0, 0, 0], sizes = [2, 8, 8], strides = [1, 1, 1]} : vector<2x8x32xf32> to vector<2x8x8xf32>
    "tpu.trace_start"() <{level = 10 : i32, message = "bqd,bkd->bqk"}> : () -> ()
    %cst_20 = arith.constant dense<0.000000e+00> : vector<2x8x8xf32>
    %80 = tpu.matmul %78, %79, %cst_20 {dimension_numbers = #tpu.dot_dimension_numbers<[2], [2], [1], [1], [0, 0, 0, 1, 1, 1], [0], [0]>} : vector<2x8x8xf32>, vector<2x8x8xf32>, vector<2x8x8xf32> -> vector<2x8x8xf32>
    "tpu.trace_stop"() : () -> ()
    %cst_21 = arith.constant 0.353553385 : f32
    %81 = vector.broadcast %cst_21 : f32 to vector<2x8x8xf32>
    %82 = arith.mulf %80, %81 : vector<2x8x8xf32>
    %83 = arith.addf %82, %77 : vector<2x8x8xf32>
    %cst_22 = arith.constant dense<0xFF800000> : vector<2x8xf32>
    %84 = vector.multi_reduction <maximumf>, %83, %cst_22 [2] : vector<2x8x8xf32> to vector<2x8xf32>
    %85 = vector.shape_cast %84 : vector<2x8xf32> to vector<2x8x1xf32>
    %86 = vector.broadcast %85 : vector<2x8x1xf32> to vector<2x8x8xf32>
    %87 = arith.subf %83, %86 : vector<2x8x8xf32>
    %88 = math.exp %87 : vector<2x8x8xf32>
    %cst_23 = arith.constant dense<0.000000e+00> : vector<2x8xf32>
    %89 = vector.multi_reduction <add>, %88, %cst_23 [2] : vector<2x8x8xf32> to vector<2x8xf32>
    %90 = vector.shape_cast %89 : vector<2x8xf32> to vector<2x8x1xf32>
    %91 = tpu.reciprocal %90 {approx = true} : vector<2x8x1xf32> -> vector<2x8x1xf32>
    %92 = vector.broadcast %91 : vector<2x8x1xf32> to vector<2x8x8xf32>
    %93 = arith.mulf %88, %92 : vector<2x8x8xf32>
    %94 = vector.extract_strided_slice %70 {offsets = [0, 0, 0], sizes = [2, 8, 8], strides = [1, 1, 1]} : vector<2x8x32xf32> to vector<2x8x8xf32>
    "tpu.trace_start"() <{level = 10 : i32, message = "bqk,bkd->bqd"}> : () -> ()
    %cst_24 = arith.constant dense<0.000000e+00> : vector<2x8x8xf32>
    %95 = tpu.matmul %93, %94, %cst_24 {dimension_numbers = #tpu.dot_dimension_numbers<[2], [1], [1], [2], [0, 0, 0, 1, 1, 2], [0], [0]>} : vector<2x8x8xf32>, vector<2x8x8xf32>, vector<2x8x8xf32> -> vector<2x8x8xf32>
    "tpu.trace_stop"() : () -> ()
    %96 = vector.extract_strided_slice %66 {offsets = [0, 0, 8], sizes = [2, 8, 8], strides = [1, 1, 1]} : vector<2x8x32xf32> to vector<2x8x8xf32>
    %97 = vector.extract_strided_slice %68 {offsets = [0, 0, 8], sizes = [2, 8, 8], strides = [1, 1, 1]} : vector<2x8x32xf32> to vector<2x8x8xf32>
    "tpu.trace_start"() <{level = 10 : i32, message = "bqd,bkd->bqk"}> : () -> ()
    %cst_25 = arith.constant dense<0.000000e+00> : vector<2x8x8xf32>
    %98 = tpu.matmul %96, %97, %cst_25 {dimension_numbers = #tpu.dot_dimension_numbers<[2], [2], [1], [1], [0, 0, 0, 1, 1, 1], [0], [0]>} : vector<2x8x8xf32>, vector<2x8x8xf32>, vector<2x8x8xf32> -> vector<2x8x8xf32>
    "tpu.trace_stop"() : () -> ()
    %cst_26 = arith.constant 0.353553385 : f32
    %99 = vector.broadcast %cst_26 : f32 to vector<2x8x8xf32>
    %100 = arith.mulf %98, %99 : vector<2x8x8xf32>
    %101 = arith.addf %100, %77 : vector<2x8x8xf32>
    %cst_27 = arith.constant dense<0xFF800000> : vector<2x8xf32>
    %102 = vector.multi_reduction <maximumf>, %101, %cst_27 [2] : vector<2x8x8xf32> to vector<2x8xf32>
    %103 = vector.shape_cast %102 : vector<2x8xf32> to vector<2x8x1xf32>
    %104 = vector.broadcast %103 : vector<2x8x1xf32> to vector<2x8x8xf32>
    %105 = arith.subf %101, %104 : vector<2x8x8xf32>
    %106 = math.exp %105 : vector<2x8x8xf32>
    %cst_28 = arith.constant dense<0.000000e+00> : vector<2x8xf32>
    %107 = vector.multi_reduction <add>, %106, %cst_28 [2] : vector<2x8x8xf32> to vector<2x8xf32>
    %108 = vector.shape_cast %107 : vector<2x8xf32> to vector<2x8x1xf32>
    %109 = tpu.reciprocal %108 {approx = true} : vector<2x8x1xf32> -> vector<2x8x1xf32>
    %110 = vector.broadcast %109 : vector<2x8x1xf32> to vector<2x8x8xf32>
    %111 = arith.mulf %106, %110 : vector<2x8x8xf32>
    %112 = vector.extract_strided_slice %70 {offsets = [0, 0, 8], sizes = [2, 8, 8], strides = [1, 1, 1]} : vector<2x8x32xf32> to vector<2x8x8xf32>
    "tpu.trace_start"() <{level = 10 : i32, message = "bqk,bkd->bqd"}> : () -> ()
    %cst_29 = arith.constant dense<0.000000e+00> : vector<2x8x8xf32>
    %113 = tpu.matmul %111, %112, %cst_29 {dimension_numbers = #tpu.dot_dimension_numbers<[2], [1], [1], [2], [0, 0, 0, 1, 1, 2], [0], [0]>} : vector<2x8x8xf32>, vector<2x8x8xf32>, vector<2x8x8xf32> -> vector<2x8x8xf32>
    "tpu.trace_stop"() : () -> ()
    %114 = vector.extract_strided_slice %66 {offsets = [0, 0, 16], sizes = [2, 8, 8], strides = [1, 1, 1]} : vector<2x8x32xf32> to vector<2x8x8xf32>
    %115 = vector.extract_strided_slice %68 {offsets = [0, 0, 16], sizes = [2, 8, 8], strides = [1, 1, 1]} : vector<2x8x32xf32> to vector<2x8x8xf32>
    "tpu.trace_start"() <{level = 10 : i32, message = "bqd,bkd->bqk"}> : () -> ()
    %cst_30 = arith.constant dense<0.000000e+00> : vector<2x8x8xf32>
    %116 = tpu.matmul %114, %115, %cst_30 {dimension_numbers = #tpu.dot_dimension_numbers<[2], [2], [1], [1], [0, 0, 0, 1, 1, 1], [0], [0]>} : vector<2x8x8xf32>, vector<2x8x8xf32>, vector<2x8x8xf32> -> vector<2x8x8xf32>
    "tpu.trace_stop"() : () -> ()
    %cst_31 = arith.constant 0.353553385 : f32
    %117 = vector.broadcast %cst_31 : f32 to vector<2x8x8xf32>
    %118 = arith.mulf %116, %117 : vector<2x8x8xf32>
    %119 = arith.addf %118, %77 : vector<2x8x8xf32>
    %cst_32 = arith.constant dense<0xFF800000> : vector<2x8xf32>
    %120 = vector.multi_reduction <maximumf>, %119, %cst_32 [2] : vector<2x8x8xf32> to vector<2x8xf32>
    %121 = vector.shape_cast %120 : vector<2x8xf32> to vector<2x8x1xf32>
    %122 = vector.broadcast %121 : vector<2x8x1xf32> to vector<2x8x8xf32>
    %123 = arith.subf %119, %122 : vector<2x8x8xf32>
    %124 = math.exp %123 : vector<2x8x8xf32>
    %cst_33 = arith.constant dense<0.000000e+00> : vector<2x8xf32>
    %125 = vector.multi_reduction <add>, %124, %cst_33 [2] : vector<2x8x8xf32> to vector<2x8xf32>
    %126 = vector.shape_cast %125 : vector<2x8xf32> to vector<2x8x1xf32>
    %127 = tpu.reciprocal %126 {approx = true} : vector<2x8x1xf32> -> vector<2x8x1xf32>
    %128 = vector.broadcast %127 : vector<2x8x1xf32> to vector<2x8x8xf32>
    %129 = arith.mulf %124, %128 : vector<2x8x8xf32>
    %130 = vector.extract_strided_slice %70 {offsets = [0, 0, 16], sizes = [2, 8, 8], strides = [1, 1, 1]} : vector<2x8x32xf32> to vector<2x8x8xf32>
    "tpu.trace_start"() <{level = 10 : i32, message = "bqk,bkd->bqd"}> : () -> ()
    %cst_34 = arith.constant dense<0.000000e+00> : vector<2x8x8xf32>
    %131 = tpu.matmul %129, %130, %cst_34 {dimension_numbers = #tpu.dot_dimension_numbers<[2], [1], [1], [2], [0, 0, 0, 1, 1, 2], [0], [0]>} : vector<2x8x8xf32>, vector<2x8x8xf32>, vector<2x8x8xf32> -> vector<2x8x8xf32>
    "tpu.trace_stop"() : () -> ()
    %132 = vector.extract_strided_slice %66 {offsets = [0, 0, 24], sizes = [2, 8, 8], strides = [1, 1, 1]} : vector<2x8x32xf32> to vector<2x8x8xf32>
    %133 = vector.extract_strided_slice %68 {offsets = [0, 0, 24], sizes = [2, 8, 8], strides = [1, 1, 1]} : vector<2x8x32xf32> to vector<2x8x8xf32>
    "tpu.trace_start"() <{level = 10 : i32, message = "bqd,bkd->bqk"}> : () -> ()
    %cst_35 = arith.constant dense<0.000000e+00> : vector<2x8x8xf32>
    %134 = tpu.matmul %132, %133, %cst_35 {dimension_numbers = #tpu.dot_dimension_numbers<[2], [2], [1], [1], [0, 0, 0, 1, 1, 1], [0], [0]>} : vector<2x8x8xf32>, vector<2x8x8xf32>, vector<2x8x8xf32> -> vector<2x8x8xf32>
    "tpu.trace_stop"() : () -> ()
    %cst_36 = arith.constant 0.353553385 : f32
    %135 = vector.broadcast %cst_36 : f32 to vector<2x8x8xf32>
    %136 = arith.mulf %134, %135 : vector<2x8x8xf32>
    %137 = arith.addf %136, %77 : vector<2x8x8xf32>
    %cst_37 = arith.constant dense<0xFF800000> : vector<2x8xf32>
    %138 = vector.multi_reduction <maximumf>, %137, %cst_37 [2] : vector<2x8x8xf32> to vector<2x8xf32>
    %139 = vector.shape_cast %138 : vector<2x8xf32> to vector<2x8x1xf32>
    %140 = vector.broadcast %139 : vector<2x8x1xf32> to vector<2x8x8xf32>
    %141 = arith.subf %137, %140 : vector<2x8x8xf32>
    %142 = math.exp %141 : vector<2x8x8xf32>
    %cst_38 = arith.constant dense<0.000000e+00> : vector<2x8xf32>
    %143 = vector.multi_reduction <add>, %142, %cst_38 [2] : vector<2x8x8xf32> to vector<2x8xf32>
    %144 = vector.shape_cast %143 : vector<2x8xf32> to vector<2x8x1xf32>
    %145 = tpu.reciprocal %144 {approx = true} : vector<2x8x1xf32> -> vector<2x8x1xf32>
    %146 = vector.broadcast %145 : vector<2x8x1xf32> to vector<2x8x8xf32>
    %147 = arith.mulf %142, %146 : vector<2x8x8xf32>
    %148 = vector.extract_strided_slice %70 {offsets = [0, 0, 24], sizes = [2, 8, 8], strides = [1, 1, 1]} : vector<2x8x32xf32> to vector<2x8x8xf32>
    "tpu.trace_start"() <{level = 10 : i32, message = "bqk,bkd->bqd"}> : () -> ()
    %cst_39 = arith.constant dense<0.000000e+00> : vector<2x8x8xf32>
    %149 = tpu.matmul %147, %148, %cst_39 {dimension_numbers = #tpu.dot_dimension_numbers<[2], [1], [1], [2], [0, 0, 0, 1, 1, 2], [0], [0]>} : vector<2x8x8xf32>, vector<2x8x8xf32>, vector<2x8x8xf32> -> vector<2x8x8xf32>
    "tpu.trace_stop"() : () -> ()
    %150 = tpu.concatenate %95, %113, %131, %149 in 2 : vector<2x8x8xf32>, vector<2x8x8xf32>, vector<2x8x8xf32>, vector<2x8x8xf32> -> vector<2x8x32xf32>
    %151 = vector.shape_cast %150 : vector<2x8x32xf32> to vector<16x32xf32>
    %152 = vector.extract_strided_slice %6 {offsets = [0, 96], sizes = [32, 32], strides = [1, 1]} : vector<64x384xf32> to vector<32x32xf32>
    %cst_40 = arith.constant dense<0.000000e+00> : vector<16x32xf32>
    %153 = tpu.matmul %151, %152, %cst_40 {dimension_numbers = #tpu.dot_dimension_numbers<[1], [0], [0], [1], [0, 0, 1, 1], [], []>} : vector<16x32xf32>, vector<32x32xf32>, vector<16x32xf32> -> vector<16x32xf32>
    %154 = vector.extract_strided_slice %7 {offsets = [3, 0], sizes = [1, 32], strides = [1, 1]} : vector<12x128xf32> to vector<1x32xf32>
    %155 = vector.broadcast %154 : vector<1x32xf32> to vector<16x32xf32>
    %156 = arith.addf %153, %155 : vector<16x32xf32>
    %157 = arith.addf %59, %156 : vector<16x32xf32>
    %158 = vector.extract_strided_slice %7 {offsets = [4, 0], sizes = [1, 32], strides = [1, 1]} : vector<12x128xf32> to vector<1x32xf32>
    %159 = vector.extract_strided_slice %7 {offsets = [5, 0], sizes = [1, 32], strides = [1, 1]} : vector<12x128xf32> to vector<1x32xf32>
    %cst_41 = arith.constant dense<0.000000e+00> : vector<16xf32>
    %160 = vector.multi_reduction <add>, %157, %cst_41 [1] : vector<16x32xf32> to vector<16xf32>
    %161 = vector.shape_cast %160 : vector<16xf32> to vector<16x1xf32>
    %cst_42 = arith.constant 3.200000e+01 : f32
    %162 = vector.broadcast %cst_42 : f32 to vector<16x1xf32>
    %163 = arith.divf %161, %162 : vector<16x1xf32>
    %164 = vector.broadcast %163 : vector<16x1xf32> to vector<16x32xf32>
    %165 = arith.subf %157, %164 : vector<16x32xf32>
    %166 = arith.mulf %165, %165 : vector<16x32xf32>
    %cst_43 = arith.constant dense<0.000000e+00> : vector<16xf32>
    %167 = vector.multi_reduction <add>, %166, %cst_43 [1] : vector<16x32xf32> to vector<16xf32>
    %168 = vector.shape_cast %167 : vector<16xf32> to vector<16x1xf32>
    %cst_44 = arith.constant 3.200000e+01 : f32
    %169 = vector.broadcast %cst_44 : f32 to vector<16x1xf32>
    %170 = arith.divf %168, %169 : vector<16x1xf32>
    %171 = vector.broadcast %163 : vector<16x1xf32> to vector<16x32xf32>
    %172 = arith.subf %157, %171 : vector<16x32xf32>
    %cst_45 = arith.constant 9.99999996E-13 : f32
    %173 = vector.broadcast %cst_45 : f32 to vector<16x1xf32>
    %174 = arith.addf %170, %173 : vector<16x1xf32>
    %175 = math.rsqrt %174 : vector<16x1xf32>
    %176 = vector.broadcast %175 : vector<16x1xf32> to vector<16x32xf32>
    %177 = arith.mulf %172, %176 : vector<16x32xf32>
    %178 = vector.broadcast %158 : vector<1x32xf32> to vector<16x32xf32>
    %179 = arith.mulf %177, %178 : vector<16x32xf32>
    %180 = vector.broadcast %159 : vector<1x32xf32> to vector<16x32xf32>
    %181 = arith.addf %179, %180 : vector<16x32xf32>
    %182 = vector.extract_strided_slice %6 {offsets = [0, 128], sizes = [32, 64], strides = [1, 1]} : vector<64x384xf32> to vector<32x64xf32>
    %cst_46 = arith.constant dense<0.000000e+00> : vector<16x64xf32>
    %183 = tpu.matmul %181, %182, %cst_46 {dimension_numbers = #tpu.dot_dimension_numbers<[1], [0], [0], [1], [0, 0, 1, 1], [], []>} : vector<16x32xf32>, vector<32x64xf32>, vector<16x64xf32> -> vector<16x64xf32>
    %184 = vector.extract_strided_slice %7 {offsets = [6, 0], sizes = [1, 64], strides = [1, 1]} : vector<12x128xf32> to vector<1x64xf32>
    %185 = vector.broadcast %184 : vector<1x64xf32> to vector<16x64xf32>
    %186 = arith.addf %183, %185 : vector<16x64xf32>
    %cst_47 = arith.constant 5.000000e-01 : f32
    %187 = vector.broadcast %cst_47 : f32 to vector<16x64xf32>
    %188 = arith.mulf %187, %186 : vector<16x64xf32>
    %cst_48 = arith.constant 4.471500e-02 : f32
    %189 = vector.broadcast %cst_48 : f32 to vector<16x64xf32>
    %190 = arith.mulf %189, %186 : vector<16x64xf32>
    %191 = arith.mulf %190, %186 : vector<16x64xf32>
    %192 = arith.mulf %191, %186 : vector<16x64xf32>
    %193 = arith.addf %186, %192 : vector<16x64xf32>
    %cst_49 = arith.constant 0.797884583 : f32
    %194 = vector.broadcast %cst_49 : f32 to vector<16x64xf32>
    %195 = arith.mulf %194, %193 : vector<16x64xf32>
    %196 = math.tanh %195 : vector<16x64xf32>
    %cst_50 = arith.constant 1.000000e+00 : f32
    %197 = vector.broadcast %cst_50 : f32 to vector<16x64xf32>
    %198 = arith.addf %197, %196 : vector<16x64xf32>
    %199 = arith.mulf %188, %198 : vector<16x64xf32>
    %200 = vector.extract_strided_slice %6 {offsets = [0, 192], sizes = [64, 32], strides = [1, 1]} : vector<64x384xf32> to vector<64x32xf32>
    %cst_51 = arith.constant dense<0.000000e+00> : vector<16x32xf32>
    %201 = tpu.matmul %199, %200, %cst_51 {dimension_numbers = #tpu.dot_dimension_numbers<[1], [0], [0], [1], [0, 0, 1, 1], [], []>} : vector<16x64xf32>, vector<64x32xf32>, vector<16x32xf32> -> vector<16x32xf32>
    %202 = vector.extract_strided_slice %7 {offsets = [7, 0], sizes = [1, 32], strides = [1, 1]} : vector<12x128xf32> to vector<1x32xf32>
    %203 = vector.broadcast %202 : vector<1x32xf32> to vector<16x32xf32>
    %204 = arith.addf %201, %203 : vector<16x32xf32>
    %205 = arith.addf %181, %204 : vector<16x32xf32>
    %206 = vector.extract_strided_slice %7 {offsets = [8, 0], sizes = [1, 32], strides = [1, 1]} : vector<12x128xf32> to vector<1x32xf32>
    %207 = vector.extract_strided_slice %7 {offsets = [9, 0], sizes = [1, 32], strides = [1, 1]} : vector<12x128xf32> to vector<1x32xf32>
    %cst_52 = arith.constant dense<0.000000e+00> : vector<16xf32>
    %208 = vector.multi_reduction <add>, %205, %cst_52 [1] : vector<16x32xf32> to vector<16xf32>
    %209 = vector.shape_cast %208 : vector<16xf32> to vector<16x1xf32>
    %cst_53 = arith.constant 3.200000e+01 : f32
    %210 = vector.broadcast %cst_53 : f32 to vector<16x1xf32>
    %211 = arith.divf %209, %210 : vector<16x1xf32>
    %212 = vector.broadcast %211 : vector<16x1xf32> to vector<16x32xf32>
    %213 = arith.subf %205, %212 : vector<16x32xf32>
    %214 = arith.mulf %213, %213 : vector<16x32xf32>
    %cst_54 = arith.constant dense<0.000000e+00> : vector<16xf32>
    %215 = vector.multi_reduction <add>, %214, %cst_54 [1] : vector<16x32xf32> to vector<16xf32>
    %216 = vector.shape_cast %215 : vector<16xf32> to vector<16x1xf32>
    %cst_55 = arith.constant 3.200000e+01 : f32
    %217 = vector.broadcast %cst_55 : f32 to vector<16x1xf32>
    %218 = arith.divf %216, %217 : vector<16x1xf32>
    %219 = vector.broadcast %211 : vector<16x1xf32> to vector<16x32xf32>
    %220 = arith.subf %205, %219 : vector<16x32xf32>
    %cst_56 = arith.constant 9.99999996E-13 : f32
    %221 = vector.broadcast %cst_56 : f32 to vector<16x1xf32>
    %222 = arith.addf %218, %221 : vector<16x1xf32>
    %223 = math.rsqrt %222 : vector<16x1xf32>
    %224 = vector.broadcast %223 : vector<16x1xf32> to vector<16x32xf32>
    %225 = arith.mulf %220, %224 : vector<16x32xf32>
    %226 = vector.broadcast %206 : vector<1x32xf32> to vector<16x32xf32>
    %227 = arith.mulf %225, %226 : vector<16x32xf32>
    %228 = vector.broadcast %207 : vector<1x32xf32> to vector<16x32xf32>
    %229 = arith.addf %227, %228 : vector<16x32xf32>
    %230 = vector.shape_cast %229 : vector<16x32xf32> to vector<2x8x32xf32>
    %231 = vector.extract_strided_slice %230 {offsets = [0, 0, 0], sizes = [2, 1, 32], strides = [1, 1, 1]} : vector<2x8x32xf32> to vector<2x1x32xf32>
    %232 = vector.shape_cast %231 : vector<2x1x32xf32> to vector<2x32xf32>
    %233 = vector.extract_strided_slice %6 {offsets = [0, 224], sizes = [32, 32], strides = [1, 1]} : vector<64x384xf32> to vector<32x32xf32>
    %cst_57 = arith.constant dense<0.000000e+00> : vector<2x32xf32>
    %234 = tpu.matmul %232, %233, %cst_57 {dimension_numbers = #tpu.dot_dimension_numbers<[1], [0], [0], [1], [0, 0, 1, 1], [], []>} : vector<2x32xf32>, vector<32x32xf32>, vector<2x32xf32> -> vector<2x32xf32>
    %235 = vector.extract_strided_slice %7 {offsets = [10, 0], sizes = [1, 32], strides = [1, 1]} : vector<12x128xf32> to vector<1x32xf32>
    %236 = vector.broadcast %235 : vector<1x32xf32> to vector<2x32xf32>
    %237 = arith.addf %234, %236 : vector<2x32xf32>
    %238 = math.tanh %237 : vector<2x32xf32>
    %239 = vector.extract_strided_slice %6 {offsets = [0, 256], sizes = [32, 128], strides = [1, 1]} : vector<64x384xf32> to vector<32x128xf32>
    %cst_58 = arith.constant dense<0.000000e+00> : vector<2x128xf32>
    %240 = tpu.matmul %238, %239, %cst_58 {dimension_numbers = #tpu.dot_dimension_numbers<[1], [0], [0], [1], [0, 0, 1, 1], [], []>} : vector<2x32xf32>, vector<32x128xf32>, vector<2x128xf32> -> vector<2x128xf32>
    %241 = vector.extract_strided_slice %7 {offsets = [11, 0], sizes = [1, 128], strides = [1, 1]} : vector<12x128xf32> to vector<1x128xf32>
    %242 = vector.broadcast %241 : vector<1x128xf32> to vector<2x128xf32>
    %243 = arith.addf %240, %242 : vector<2x128xf32>
    %c0_59 = arith.constant 0 : index
    %c0_60 = arith.constant 0 : index
    %244 = vector.load %arg5[%c0_59, %c0_60] : memref<2x128xf32, #tpu.memory_space<vmem>>, vector<2x128xf32>
    tpu.vector_store %arg5[%c0_59, %c0_60], %243 {strides = array<i32>} : memref<2x128xf32, #tpu.memory_space<vmem>>, vector<2x128xf32>,
    return
  }
}

</mosaic_0001>

<llo_original>
// kernel: simplified_improved_model.1
$region0: #{simplified_improved_model.1}
  #allocation0 [shape = 'u32[]', space=smem, size = 0x4, offset = 0x4, fixed_abs, tag = 'smem constant byte address 0x4 - core index']
  #allocation1 [shape = 'u32[144,128]{1,0:T(1,128)}', space=vmem, size = 0x12000, scoped, tag = 'internal scratch']
  %s0 = inlined_call_operand.vmem [shape: s32[2,2,8], index: 0, kind: input, shape index: {}]
  %s1 = inlined_call_operand.vmem [shape: f32[2,8], index: 1, kind: input, shape index: {}]
  %s2 = inlined_call_operand.vmem [shape: f32[60,32], index: 2, kind: input, shape index: {}]
  %s3 = inlined_call_operand.hbm [shape: f32[64,384], index: 3, kind: input, shape index: {}]
  %s4 = inlined_call_operand.vmem [shape: f32[12,128], index: 4, kind: input, shape index: {}]
  %s5 = inlined_call_operand.hbm [shape: f32[2,128], index: 5, kind: output, shape index: {}]
  %s6 = sld [smem:[#allocation0]]
  $region34: #{simplified_improved_model.1} parent=0
    _
  %s8 = ssub.s32 1, %s6
  %s9 = scalar_select 0, %s8, %s6
  $region1: #{simplified_improved_model.1} parent=0
    #allocation2 [shape = 'u8[98304]{0}', space=vmem, size = 0x18000, scoped, tag = 'input window, operand 3, single buffered']
    #allocation3 [shape = 's32[1]{0}', space=sflag, size = 0x4, scoped, tag = 'scoped memory for simplified_improved_model.1']
    #allocation4 [shape = 's32[1]{0}', space=sflag, size = 0x4, scoped, tag = 'scoped memory for simplified_improved_model.1']
    #allocation5 [shape = 'u8[1024]{0}', space=vmem, size = 0x400, scoped, tag = 'output window, operand 0, single buffered']
    %10 = vsyncpa [#allocation3], 0
    %11 = vsyncpa [#allocation4], 0
    // Predicated region
    $region2: #{simplified_improved_model.1} parent=1 // pred_check
      _
    $region3: #{simplified_improved_model.1} parent=1 // pred_check_branch
      %13 = sbr.rel (0) target = $region5
    $region4: #{simplified_improved_model.1} parent=1 // pred_region
      _
    $region5: #{simplified_improved_model.1} parent=1 // pred_fallthru
      _
    // Predicated region
    $region6: #{simplified_improved_model.1} parent=1 // pred_check
      _
    $region7: #{simplified_improved_model.1} parent=1 // pred_check_branch
      %15 = sbr.rel (0) target = $region9
    $region8: #{simplified_improved_model.1} parent=1 // pred_region
      _
    $region9: #{simplified_improved_model.1} parent=1 // pred_fallthru
      _
    // Predicated region
    $region10: #{simplified_improved_model.1} parent=1 // pred_check
      _
    $region11: #{simplified_improved_model.1} parent=1 // pred_check_branch
      %17 = sbr.rel (0) target = $region13
    $region12: #{simplified_improved_model.1} parent=1 // pred_region
      _
    $region13: #{simplified_improved_model.1} parent=1 // pred_fallthru
      _
    // Predicated region
    $region14: #{simplified_improved_model.1} parent=1 // pred_check
      _
    $region15: #{simplified_improved_model.1} parent=1 // pred_check_branch
      %19 = sbr.rel (0) target = $region17
    $region16: #{simplified_improved_model.1} parent=1 // pred_region
      %s21 = ssub.s32 3072, 3072
      %22 = vsyncadd [#allocation3], %s21
      %s23 = sshll.u32 [#allocation2], 4
      %s24 = int_to_ptr.vmem [resolvable:$true] %s23
      %29 = dma.hbm_to_vmem [thread:$0]  %s3, 3072, %s24, [#allocation3], 384, 384, 24
    $region17: #{simplified_improved_model.1} parent=1 // pred_fallthru
      _
    // Predicated region
    $region18: #{simplified_improved_model.1} parent=1 // pred_check
      _
    $region19: #{simplified_improved_model.1} parent=1 // pred_check_branch
      %31 = sbr.rel (0) target = $region21
    $region20: #{simplified_improved_model.1} parent=1 // pred_region
      _
    $region21: #{simplified_improved_model.1} parent=1 // pred_fallthru
      _
    // Predicated region
    $region22: #{simplified_improved_model.1} parent=1 // pred_check
      _
    $region23: #{simplified_improved_model.1} parent=1 // pred_check_branch
      %33 = sbr.rel (0) target = $region25
    $region24: #{simplified_improved_model.1} parent=1 // pred_region
      %34 = dma.done [#allocation3], 3072
    $region25: #{simplified_improved_model.1} parent=1 // pred_fallthru
      _
    %v35 = vld [vmem:[%s0] sm:$0x3]
    %s36 = scalar_lea.vmem %s0, 2
    %v37 = vld [vmem:[%s36] sm:$0x3]
    %v38 = vld [vmem:[%s1] sm:$0x3]
    %v39 = vld [vmem:[%s2] sm:$0xff]
    %v40 = vld [vmem:[%s2 + $0x8] sm:$0xff]
    %v41 = vld [vmem:[%s2 + $0x10] sm:$0xff]
    %v42 = vld [vmem:[%s2 + $0x18] sm:$0xff]
    %v43 = vld [vmem:[%s2 + $0x20] sm:$0xff]
    %v44 = vld [vmem:[%s2 + $0x28] sm:$0xff]
    %v45 = vld [vmem:[%s2 + $0x30] sm:$0xff]
    %v46 = vld [vmem:[%s2 + $0x38] sm:$0xf]
    %v47 = vld [vmem:[#allocation2] sm:$0xff]
    %v48 = vld [vmem:[#allocation2 + $0x8] sm:$0xff]
    %v49 = vld [vmem:[#allocation2 + $0x10] sm:$0xff]
    %v50 = vld [vmem:[#allocation2 + $0x18] sm:$0xff]
    %v51 = vld [vmem:[#allocation2 + $0x20] sm:$0xff]
    %v52 = vld [vmem:[#allocation2 + $0x28] sm:$0xff]
    %v53 = vld [vmem:[#allocation2 + $0x30] sm:$0xff]
    %v54 = vld [vmem:[#allocation2 + $0x38] sm:$0xff]
    %v55 = vld [vmem:[#allocation2 + $0x40] sm:$0xff]
    %v56 = vld [vmem:[#allocation2 + $0x48] sm:$0xff]
    %v57 = vld [vmem:[#allocation2 + $0x50] sm:$0xff]
    %v58 = vld [vmem:[#allocation2 + $0x58] sm:$0xff]
    %v59 = vld [vmem:[#allocation2 + $0x68] sm:$0xff]
    %v60 = vld [vmem:[#allocation2 + $0x80] sm:$0xff]
    %v61 = vld [vmem:[#allocation2 + $0x98] sm:$0xff]
    %v62 = vld [vmem:[#allocation2 + $0xb0] sm:$0xff]
    %v63 = vld [vmem:[%s4] sm:$0xff]
    %v64 = vld [vmem:[%s4 + $0x8] sm:$0xf]
    %v65 = vlaneseq
    %v66 = vand.u32 %v65, 127
    %v67 = vlaneseq
    %v68 = vshrl.u32 %v67, 7
    %v69 = vsub.s32 0, %v68
    %v70 = vrot.slane %v35, %v69
    %72 = vbcast.lane.b32.xlu0 %v70, 256
    %v73 = vpop.permute.xlu0 %72
    %v74 = vlaneseq
    %v75 = vshrl.u32 %v74, 7
    %v76 = vsub.s32 1, %v75
    %v77 = vrot.slane %v35, %v76
    %79 = vbcast.lane.b32.xlu0 %v77, 256
    %v80 = vpop.permute.xlu0 %79
    %vm81 = vcmp.eq.s32.totalorder %v66, %v73
    %vm82 = vcmp.eq.s32.totalorder %v66, %v80
    %v83 = vsel %vm81, 1, 0
    %v84 = vsel %vm82, 1, 0
    %v85 = vcvt.s32.f32 %v83
    %v86 = vcvt.s32.f32 %v84
    %v87 = vlaneseq
    %v88 = vshrl.u32 %v87, 7
    %v89 = vsub.s32 0, %v88
    %v90 = vrot.slane %v37, %v89
    %92 = vbcast.lane.b32.xlu0 %v90, 256
    %v93 = vpop.permute.xlu0 %92
    %v94 = vlaneseq
    %v95 = vshrl.u32 %v94, 7
    %v96 = vsub.s32 1, %v95
    %v97 = vrot.slane %v37, %v96
    %99 = vbcast.lane.b32.xlu0 %v97, 256
    %v100 = vpop.permute.xlu0 %99
    %vm101 = vcmp.eq.s32.totalorder %v93, 1
    %vm102 = vcmp.eq.s32.totalorder %v100, 1
    %v103 = vsel %vm101, 1, 0
    %v104 = vsel %vm102, 1, 0
    %vm105 = vcmp.eq.s32.totalorder %v103, 1
    %vm106 = vcmp.eq.s32.totalorder %v104, 1
    %v107 = vlaneseq
    %v108 = vshrl.u32 %v107, 7
    %v109 = vsub.s32 3, %v108
    %v110 = vrot.slane %v46, %v109
    %v111 = vlaneseq
    %v112 = vshrl.u32 %v111, 7
    %v113 = vsub.s32 2, %v112
    %v114 = vrot.slane %v46, %v113
    %v115 = vsel %vm105, %v110, %v114
    %v116 = vsel %vm106, %v110, %v114
    %vm119 = vcmask 1045504
    %v120 = vrot.slane %v45, 2
    %v121 = vrot.slane %v46, 2
    %v122 = vsel %vm119, %v120, %v121
    %vm124 = vcmask 408576
    %v126 = vsel %vm124, %v85, 0
    %v129 = vsel %vm124, %v86, 0
    %vm131 = vcmask 1041408
    %v132 = vsel %vm131, %v45, 0
    %134 = vmatprep.subr.mxu0 0.0
    %135 = vmatpush1.msra.mxu0 0.0
    %136 = vmatprep.subr.mxu0 0.0
    %137 = vmatpush1.msra.mxu0 0.0
    %138 = vmatprep.subr.mxu0 0.0
    %139 = vmatpush1.msra.mxu0 0.0
    %140 = vmatprep.subr.mxu0 0.0
    %141 = vmatpush1.msra.mxu0 0.0
    %142 = vmatprep.subr.mxu0 0.0
    %143 = vmatpush1.msra.mxu0 0.0
    %144 = vmatprep.subr.mxu0 0.0
    %145 = vmatpush1.msra.mxu0 0.0
    %146 = vmatprep.subr.mxu0 0.0
    %147 = vmatpush1.msra.mxu0 0.0
    %148 = vmatprep.subr.mxu0 0.0
    %149 = vmatpush1.msra.mxu0 0.0
    %150 = vmatprep.subr.mxu0 0.0
    %151 = vmatpush1.msra.mxu0 0.0
    %152 = vmatprep.subr.mxu0 0.0
    %153 = vmatpush1.msra.mxu0 %v132
    %154 = vmatprep.subr.mxu0 0.0
    %155 = vmatpush1.msra.mxu0 %v44
    %156 = vmatprep.subr.mxu0 0.0
    %157 = vmatpush1.msra.mxu0 %v43
    %158 = vmatprep.subr.mxu0 0.0
    %159 = vmatpush1.msra.mxu0 %v42
    %160 = vmatprep.subr.mxu0 0.0
    %161 = vmatpush1.msra.mxu0 %v41
    %162 = vmatprep.subr.mxu0 0.0
    %163 = vmatpush1.msra.mxu0 %v40
    %164 = vmatprep.subr.mxu0 0.0
    %165 = vmatpush1.msra.mxu0 %v39
    %166 = vmatprep.subr.mxu0 0.0
    %167 = vmatpush2.msra.mxu0 0.0
    %168 = vmatprep.subr.mxu0 0.0
    %169 = vmatpush2.msra.mxu0 0.0
    %170 = vmatprep.subr.mxu0 0.0
    %171 = vmatpush2.msra.mxu0 0.0
    %172 = vmatprep.subr.mxu0 0.0
    %173 = vmatpush2.msra.mxu0 0.0
    %174 = vmatprep.subr.mxu0 0.0
    %175 = vmatpush2.msra.mxu0 0.0
    %176 = vmatprep.subr.mxu0 0.0
    %177 = vmatpush2.msra.mxu0 0.0
    %178 = vmatprep.subr.mxu0 0.0
    %179 = vmatpush2.msra.mxu0 0.0
    %180 = vmatprep.subr.mxu0 0.0
    %181 = vmatpush2.msra.mxu0 0.0
    %182 = vmatprep.subr.mxu0 0.0
    %183 = vmatpush2.msra.mxu0 0.0
    %184 = vmatprep.subr.mxu0 0.0
    %185 = vmatpush2.msra.mxu0 0.0
    %186 = vmatprep.subr.mxu0 0.0
    %187 = vmatpush2.msra.mxu0 0.0
    %188 = vmatprep.subr.mxu0 0.0
    %189 = vmatpush2.msra.mxu0 0.0
    %190 = vmatprep.subr.mxu0 0.0
    %191 = vmatpush2.msra.mxu0 0.0
    %192 = vmatprep.subr.mxu0 0.0
    %193 = vmatpush2.msra.mxu0 0.0
    %194 = vmatprep.subr.mxu0 0.0
    %195 = vmatpush2.msra.mxu0 0.0
    %196 = vmatprep.subr.mxu0 0.0
    %197 = vmatpush2.msra.mxu0 0.0
    %198 = vmatprep.mubr.f32.mxu0 0.0
    %199 = vmatmul.mubr.f32.gmra.mxu0 %v126
    %v200 = vpop.f32.mrf.mxu0
    %v201 = vadd.f32 %v122, %v200
    %v202 = vpop.f32.mrf.mxu0
    %203 = vmatprep.mubr.f32.mxu0 0.0
    %204 = vmatmul.mubr.f32.gmra.mxu0 %v129
    %v205 = vpop.f32.mrf.mxu0
    %v206 = vadd.f32 %v122, %v205
    %v207 = vpop.f32.mrf.mxu0
    %208 = vdwg.mxu0
    %v209 = vadd.f32 %v201, %v115
    %v210 = vadd.f32 %v206, %v116
    %vm211 = vcmask 261120
    %v212 = vsel %vm211, %v209, 0.0
    %213 = vadd.xlane.f32.xlu0 %v212
    %v214 = vpop.xlane.xlu0 %213
    %v215 = vsel %vm211, %v210, 0.0
    %216 = vadd.xlane.f32.xlu0 %v215
    %v217 = vpop.xlane.xlu0 %216
    %v218 = vrcp.pop 32.0
    %v219 = vmul.f32 %v214, %v218
    %v220 = vmul.f32 %v217, %v218
    %v221 = vsub.f32 %v209, %v219
    %v222 = vsub.f32 %v210, %v220
    %v223 = vmul.f32 %v221, %v221
    %v224 = vmul.f32 %v222, %v222
    %v225 = vsel %vm211, %v223, 0.0
    %226 = vadd.xlane.f32.xlu0 %v225
    %v227 = vpop.xlane.xlu0 %226
    %v228 = vsel %vm211, %v224, 0.0
    %229 = vadd.xlane.f32.xlu0 %v228
    %v230 = vpop.xlane.xlu0 %229
    %v231 = vmul.f32 %v227, %v218
    %v232 = vmul.f32 %v230, %v218
    %v233 = vadd.f32 %v231, 1e-12
    %v234 = vadd.f32 %v232, 1e-12
    %v235 = vrsqrt.pop %v233
    %v236 = vrsqrt.pop %v234
    %v237 = vmul.f32 %v221, %v235
    %v238 = vmul.f32 %v222, %v236
    %v239 = vlaneseq
    %v240 = vshrl.u32 %v239, 7
    %v241 = vsub.s32 0, %v240
    %v242 = vrot.slane %v63, %v241
    %v243 = vmul.f32 %v237, %v242
    %v244 = vmul.f32 %v238, %v242
    %v245 = vlaneseq
    %v246 = vshrl.u32 %v245, 7
    %v247 = vsub.s32 1, %v246
    %v248 = vrot.slane %v63, %v247
    %v249 = vadd.f32 %v243, %v248
    %v250 = vadd.f32 %v244, %v248
    %v251 = vlaneseq
    %v252 = vshrl.u32 %v251, 7
    %v253 = vsub.s32 2, %v252
    %v254 = vrot.slane %v63, %v253
    %v256 = vsel %vm211, %v249, 0
    %v259 = vsel %vm211, %v250, 0
    %261 = vmatprep.subr.mxu0 0.0
    %262 = vmatpush1.msra.mxu0 0.0
    %263 = vmatprep.subr.mxu0 0.0
    %264 = vmatpush1.msra.mxu0 0.0
    %265 = vmatprep.subr.mxu0 0.0
    %266 = vmatpush1.msra.mxu0 0.0
    %267 = vmatprep.subr.mxu0 0.0
    %268 = vmatpush1.msra.mxu0 0.0
    %269 = vmatprep.subr.mxu0 0.0
    %270 = vmatpush1.msra.mxu0 0.0
    %271 = vmatprep.subr.mxu0 0.0
    %272 = vmatpush1.msra.mxu0 0.0
    %273 = vmatprep.subr.mxu0 0.0
    %274 = vmatpush1.msra.mxu0 0.0
    %275 = vmatprep.subr.mxu0 0.0
    %276 = vmatpush1.msra.mxu0 0.0
    %277 = vmatprep.subr.mxu0 0.0
    %278 = vmatpush1.msra.mxu0 0.0
    %279 = vmatprep.subr.mxu0 0.0
    %280 = vmatpush1.msra.mxu0 0.0
    %281 = vmatprep.subr.mxu0 0.0
    %282 = vmatpush1.msra.mxu0 0.0
    %283 = vmatprep.subr.mxu0 0.0
    %284 = vmatpush1.msra.mxu0 0.0
    %285 = vmatprep.subr.mxu0 0.0
    %286 = vmatpush1.msra.mxu0 %v56
    %287 = vmatprep.subr.mxu0 0.0
    %288 = vmatpush1.msra.mxu0 %v53
    %289 = vmatprep.subr.mxu0 0.0
    %290 = vmatpush1.msra.mxu0 %v50
    %291 = vmatprep.subr.mxu0 0.0
    %292 = vmatpush1.msra.mxu0 %v47
    %293 = vmatprep.subr.mxu0 0.0
    %294 = vmatpush2.msra.mxu0 0.0
    %295 = vmatprep.subr.mxu0 0.0
    %296 = vmatpush2.msra.mxu0 0.0
    %297 = vmatprep.subr.mxu0 0.0
    %298 = vmatpush2.msra.mxu0 0.0
    %299 = vmatprep.subr.mxu0 0.0
    %300 = vmatpush2.msra.mxu0 0.0
    %301 = vmatprep.subr.mxu0 0.0
    %302 = vmatpush2.msra.mxu0 0.0
    %303 = vmatprep.subr.mxu0 0.0
    %304 = vmatpush2.msra.mxu0 0.0
    %305 = vmatprep.subr.mxu0 0.0
    %306 = vmatpush2.msra.mxu0 0.0
    %307 = vmatprep.subr.mxu0 0.0
    %308 = vmatpush2.msra.mxu0 0.0
    %309 = vmatprep.subr.mxu0 0.0
    %310 = vmatpush2.msra.mxu0 0.0
    %311 = vmatprep.subr.mxu0 0.0
    %312 = vmatpush2.msra.mxu0 0.0
    %313 = vmatprep.subr.mxu0 0.0
    %314 = vmatpush2.msra.mxu0 0.0
    %315 = vmatprep.subr.mxu0 0.0
    %316 = vmatpush2.msra.mxu0 0.0
    %317 = vmatprep.subr.mxu0 0.0
    %318 = vmatpush2.msra.mxu0 0.0
    %319 = vmatprep.subr.mxu0 0.0
    %320 = vmatpush2.msra.mxu0 0.0
    %321 = vmatprep.subr.mxu0 0.0
    %322 = vmatpush2.msra.mxu0 0.0
    %323 = vmatprep.subr.mxu0 0.0
    %324 = vmatpush2.msra.mxu0 0.0
    %325 = vmatprep.mubr.f32.mxu0 0.0
    %326 = vmatmul.mubr.f32.gmra.mxu0 %v256
    %v327 = vpop.f32.mrf.mxu0
    %v328 = vadd.f32 %v254, %v327
    %v329 = vpop.f32.mrf.mxu0
    %330 = vmatprep.mubr.f32.mxu0 0.0
    %331 = vmatmul.mubr.f32.gmra.mxu0 %v259
    %v332 = vpop.f32.mrf.mxu0
    %v333 = vadd.f32 %v254, %v332
    %v334 = vpop.f32.mrf.mxu0
    %335 = vdwg.mxu0
    %v336 = vsub.f32 1.0, %v38
    %v337 = vmul.f32 %v336, -1e+09
    %v340 = vunpack.c.l.s4 1966171168
    %v341 = vunpack.c.0.s8 %v340
    %v342 = vlaneseq
    %v343 = vshrl.u32 %v342, 7
    %v344 = vsub.s32 %v341, %v343
    %v345 = vrot.slane %v337, %v344
    %v346 = vcombine.high %v345, %v345
    %v348 = vunpack.c.l.s4 1966171168
    %v349 = vunpack.c.0.s8 %v348
    %v350 = vlaneseq
    %v351 = vshrl.u32 %v350, 7
    %v352 = vsub.s32 %v349, %v351
    %v353 = vrot.slane %v345, %v352
    %v355 = vunpack.c.l.s4 1966171168
    %v356 = vunpack.c.0.s8 %v355
    %v357 = vlaneseq
    %v358 = vshrl.u32 %v357, 7
    %v359 = vsub.s32 %v356, %v358
    %v360 = vrot.slane %v346, %v359
    %v361 = vlaneseq
    %v362 = vshrl.u32 %v361, 7
    %v363 = vsub.s32 0, %v362
    %v364 = vrot.slane %v353, %v363
    %v365 = vlaneseq
    %v366 = vshrl.u32 %v365, 7
    %v367 = vsub.s32 0, %v366
    %v368 = vrot.slane %v360, %v367
    %372 = vrot.lane.b32.xlu0 %v328, 96
    %v373 = vpop.permute.xlu0 %372
    %vm374 = vcmask 64512
    %v375 = vsel %vm374, %v328, 0
    %v377 = vsel %vm374, %v373, 0
    %379 = vmatprep.subr.mxu0 0.0
    %380 = vmatpush1.xpose.msra.mxu0 0.0
    %381 = vmatprep.subr.mxu0 0.0
    %382 = vmatpush1.xpose.msra.mxu0 0.0
    %383 = vmatprep.subr.mxu0 0.0
    %384 = vmatpush1.xpose.msra.mxu0 0.0
    %385 = vmatprep.subr.mxu0 0.0
    %386 = vmatpush1.xpose.msra.mxu0 0.0
    %387 = vmatprep.subr.mxu0 0.0
    %388 = vmatpush1.xpose.msra.mxu0 0.0
    %389 = vmatprep.subr.mxu0 0.0
    %390 = vmatpush1.xpose.msra.mxu0 0.0
    %391 = vmatprep.subr.mxu0 0.0
    %392 = vmatpush1.xpose.msra.mxu0 0.0
    %393 = vmatprep.subr.mxu0 0.0
    %394 = vmatpush1.xpose.msra.mxu0 0.0
    %395 = vmatprep.subr.mxu0 0.0
    %396 = vmatpush1.xpose.msra.mxu0 0.0
    %397 = vmatprep.subr.mxu0 0.0
    %398 = vmatpush1.xpose.msra.mxu0 0.0
    %399 = vmatprep.subr.mxu0 0.0
    %400 = vmatpush1.xpose.msra.mxu0 0.0
    %401 = vmatprep.subr.mxu0 0.0
    %402 = vmatpush1.xpose.msra.mxu0 0.0
    %403 = vmatprep.subr.mxu0 0.0
    %404 = vmatpush1.xpose.msra.mxu0 0.0
    %405 = vmatprep.subr.mxu0 0.0
    %406 = vmatpush1.xpose.msra.mxu0 0.0
    %407 = vmatprep.subr.mxu0 0.0
    %408 = vmatpush1.xpose.msra.mxu0 0.0
    %409 = vmatprep.subr.mxu0 0.0
    %410 = vmatpush1.xpose.msra.mxu0 %v377
    %411 = vmatprep.subr.mxu0 0.0
    %412 = vmatpush2.xpose.msra.mxu0 0.0
    %413 = vmatprep.subr.mxu0 0.0
    %414 = vmatpush2.xpose.msra.mxu0 0.0
    %415 = vmatprep.subr.mxu0 0.0
    %416 = vmatpush2.xpose.msra.mxu0 0.0
    %417 = vmatprep.subr.mxu0 0.0
    %418 = vmatpush2.xpose.msra.mxu0 0.0
    %419 = vmatprep.subr.mxu0 0.0
    %420 = vmatpush2.xpose.msra.mxu0 0.0
    %421 = vmatprep.subr.mxu0 0.0
    %422 = vmatpush2.xpose.msra.mxu0 0.0
    %423 = vmatprep.subr.mxu0 0.0
    %424 = vmatpush2.xpose.msra.mxu0 0.0
    %425 = vmatprep.subr.mxu0 0.0
    %426 = vmatpush2.xpose.msra.mxu0 0.0
    %427 = vmatprep.subr.mxu0 0.0
    %428 = vmatpush2.xpose.msra.mxu0 0.0
    %429 = vmatprep.subr.mxu0 0.0
    %430 = vmatpush2.xpose.msra.mxu0 0.0
    %431 = vmatprep.subr.mxu0 0.0
    %432 = vmatpush2.xpose.msra.mxu0 0.0
    %433 = vmatprep.subr.mxu0 0.0
    %434 = vmatpush2.xpose.msra.mxu0 0.0
    %435 = vmatprep.subr.mxu0 0.0
    %436 = vmatpush2.xpose.msra.mxu0 0.0
    %437 = vmatprep.subr.mxu0 0.0
    %438 = vmatpush2.xpose.msra.mxu0 0.0
    %439 = vmatprep.subr.mxu0 0.0
    %440 = vmatpush2.xpose.msra.mxu0 0.0
    %441 = vmatprep.subr.mxu0 0.0
    %442 = vmatpush2.xpose.msra.mxu0 0.0
    %443 = vmatprep.mubr.f32.mxu0 0.0
    %444 = vmatmul.mubr.f32.gmra.mxu0 %v375
    %v445 = vpop.f32.mrf.mxu0
    %v446 = vadd.f32 0.0, %v445
    %v447 = vpop.f32.mrf.mxu0
    %448 = vdwg.mxu0
    %450 = vrot.lane.b32.xlu0 %v333, 96
    %v451 = vpop.permute.xlu0 %450
    %v452 = vsel %vm374, %v333, 0
    %v454 = vsel %vm374, %v451, 0
    %456 = vmatprep.subr.mxu0 0.0
    %457 = vmatpush1.xpose.msra.mxu0 0.0
    %458 = vmatprep.subr.mxu0 0.0
    %459 = vmatpush1.xpose.msra.mxu0 0.0
    %460 = vmatprep.subr.mxu0 0.0
    %461 = vmatpush1.xpose.msra.mxu0 0.0
    %462 = vmatprep.subr.mxu0 0.0
    %463 = vmatpush1.xpose.msra.mxu0 0.0
    %464 = vmatprep.subr.mxu0 0.0
    %465 = vmatpush1.xpose.msra.mxu0 0.0
    %466 = vmatprep.subr.mxu0 0.0
    %467 = vmatpush1.xpose.msra.mxu0 0.0
    %468 = vmatprep.subr.mxu0 0.0
    %469 = vmatpush1.xpose.msra.mxu0 0.0
    %470 = vmatprep.subr.mxu0 0.0
    %471 = vmatpush1.xpose.msra.mxu0 0.0
    %472 = vmatprep.subr.mxu0 0.0
    %473 = vmatpush1.xpose.msra.mxu0 0.0
    %474 = vmatprep.subr.mxu0 0.0
    %475 = vmatpush1.xpose.msra.mxu0 0.0
    %476 = vmatprep.subr.mxu0 0.0
    %477 = vmatpush1.xpose.msra.mxu0 0.0
    %478 = vmatprep.subr.mxu0 0.0
    %479 = vmatpush1.xpose.msra.mxu0 0.0
    %480 = vmatprep.subr.mxu0 0.0
    %481 = vmatpush1.xpose.msra.mxu0 0.0
    %482 = vmatprep.subr.mxu0 0.0
    %483 = vmatpush1.xpose.msra.mxu0 0.0
    %484 = vmatprep.subr.mxu0 0.0
    %485 = vmatpush1.xpose.msra.mxu0 0.0
    %486 = vmatprep.subr.mxu0 0.0
    %487 = vmatpush1.xpose.msra.mxu0 %v454
    %488 = vmatprep.subr.mxu0 0.0
    %489 = vmatpush2.xpose.msra.mxu0 0.0
    %490 = vmatprep.subr.mxu0 0.0
    %491 = vmatpush2.xpose.msra.mxu0 0.0
    %492 = vmatprep.subr.mxu0 0.0
    %493 = vmatpush2.xpose.msra.mxu0 0.0
    %494 = vmatprep.subr.mxu0 0.0
    %495 = vmatpush2.xpose.msra.mxu0 0.0
    %496 = vmatprep.subr.mxu0 0.0
    %497 = vmatpush2.xpose.msra.mxu0 0.0
    %498 = vmatprep.subr.mxu0 0.0
    %499 = vmatpush2.xpose.msra.mxu0 0.0
    %500 = vmatprep.subr.mxu0 0.0
    %501 = vmatpush2.xpose.msra.mxu0 0.0
    %502 = vmatprep.subr.mxu0 0.0
    %503 = vmatpush2.xpose.msra.mxu0 0.0
    %504 = vmatprep.subr.mxu0 0.0
    %505 = vmatpush2.xpose.msra.mxu0 0.0
    %506 = vmatprep.subr.mxu0 0.0
    %507 = vmatpush2.xpose.msra.mxu0 0.0
    %508 = vmatprep.subr.mxu0 0.0
    %509 = vmatpush2.xpose.msra.mxu0 0.0
    %510 = vmatprep.subr.mxu0 0.0
    %511 = vmatpush2.xpose.msra.mxu0 0.0
    %512 = vmatprep.subr.mxu0 0.0
    %513 = vmatpush2.xpose.msra.mxu0 0.0
    %514 = vmatprep.subr.mxu0 0.0
    %515 = vmatpush2.xpose.msra.mxu0 0.0
    %516 = vmatprep.subr.mxu0 0.0
    %517 = vmatpush2.xpose.msra.mxu0 0.0
    %518 = vmatprep.subr.mxu0 0.0
    %519 = vmatpush2.xpose.msra.mxu0 0.0
    %520 = vmatprep.mubr.f32.mxu0 0.0
    %521 = vmatmul.mubr.f32.gmra.mxu0 %v452
    %v522 = vpop.f32.mrf.mxu0
    %v523 = vadd.f32 0.0, %v522
    %v524 = vpop.f32.mrf.mxu0
    %525 = vdwg.mxu0
    %v526 = vmul.f32 %v446, 0.35355338
    %v527 = vmul.f32 %v523, 0.35355338
    %v528 = vadd.f32 %v526, %v364
    %v529 = vadd.f32 %v527, %v368
    %v530 = vsel %vm374, %v528, -inf
    %531 = vmax.xlane.f32.xlu0 %v530
    %v532 = vpop.xlane.xlu0 %531
    %v533 = vsel %vm374, %v529, -inf
    %534 = vmax.xlane.f32.xlu0 %v533
    %v535 = vpop.xlane.xlu0 %534
    %v536 = vsub.f32 %v528, %v532
    %v537 = vsub.f32 %v529, %v535
    %v538 = vmul.f32 %v536, 1.442695
    %v539 = vpow.pop %v538
    %v540 = vmul.f32 %v537, 1.442695
    %v541 = vpow.pop %v540
    %v542 = vsel %vm374, %v539, 0.0
    %543 = vadd.xlane.f32.xlu0 %v542
    %v544 = vpop.xlane.xlu0 %543
    %v545 = vsel %vm374, %v541, 0.0
    %546 = vadd.xlane.f32.xlu0 %v545
    %v547 = vpop.xlane.xlu0 %546
    %v548 = vrcp.pop %v544
    %v549 = vrcp.pop %v547
    %v550 = vmul.f32 %v539, %v548
    %v551 = vmul.f32 %v541, %v549
    %552 = vrot.lane.b32.xlu0 %v328, 64
    %v553 = vpop.permute.xlu0 %552
    %v556 = vsel %vm374, %v550, 0
    %558 = vmatprep.subr.mxu0 0.0
    %559 = vmatpush1.msra.mxu0 0.0
    %560 = vmatprep.subr.mxu0 0.0
    %561 = vmatpush1.msra.mxu0 0.0
    %562 = vmatprep.subr.mxu0 0.0
    %563 = vmatpush1.msra.mxu0 0.0
    %564 = vmatprep.subr.mxu0 0.0
    %565 = vmatpush1.msra.mxu0 0.0
    %566 = vmatprep.subr.mxu0 0.0
    %567 = vmatpush1.msra.mxu0 0.0
    %568 = vmatprep.subr.mxu0 0.0
    %569 = vmatpush1.msra.mxu0 0.0
    %570 = vmatprep.subr.mxu0 0.0
    %571 = vmatpush1.msra.mxu0 0.0
    %572 = vmatprep.subr.mxu0 0.0
    %573 = vmatpush1.msra.mxu0 0.0
    %574 = vmatprep.subr.mxu0 0.0
    %575 = vmatpush1.msra.mxu0 0.0
    %576 = vmatprep.subr.mxu0 0.0
    %577 = vmatpush1.msra.mxu0 0.0
    %578 = vmatprep.subr.mxu0 0.0
    %579 = vmatpush1.msra.mxu0 0.0
    %580 = vmatprep.subr.mxu0 0.0
    %581 = vmatpush1.msra.mxu0 0.0
    %582 = vmatprep.subr.mxu0 0.0
    %583 = vmatpush1.msra.mxu0 0.0
    %584 = vmatprep.subr.mxu0 0.0
    %585 = vmatpush1.msra.mxu0 0.0
    %586 = vmatprep.subr.mxu0 0.0
    %587 = vmatpush1.msra.mxu0 0.0
    %588 = vmatprep.subr.mxu0 0.0
    %589 = vmatpush1.msra.mxu0 %v553
    %590 = vmatprep.subr.mxu0 0.0
    %591 = vmatpush2.msra.mxu0 0.0
    %592 = vmatprep.subr.mxu0 0.0
    %593 = vmatpush2.msra.mxu0 0.0
    %594 = vmatprep.subr.mxu0 0.0
    %595 = vmatpush2.msra.mxu0 0.0
    %596 = vmatprep.subr.mxu0 0.0
    %597 = vmatpush2.msra.mxu0 0.0
    %598 = vmatprep.subr.mxu0 0.0
    %599 = vmatpush2.msra.mxu0 0.0
    %600 = vmatprep.subr.mxu0 0.0
    %601 = vmatpush2.msra.mxu0 0.0
    %602 = vmatprep.subr.mxu0 0.0
    %603 = vmatpush2.msra.mxu0 0.0
    %604 = vmatprep.subr.mxu0 0.0
    %605 = vmatpush2.msra.mxu0 0.0
    %606 = vmatprep.subr.mxu0 0.0
    %607 = vmatpush2.msra.mxu0 0.0
    %608 = vmatprep.subr.mxu0 0.0
    %609 = vmatpush2.msra.mxu0 0.0
    %610 = vmatprep.subr.mxu0 0.0
    %611 = vmatpush2.msra.mxu0 0.0
    %612 = vmatprep.subr.mxu0 0.0
    %613 = vmatpush2.msra.mxu0 0.0
    %614 = vmatprep.subr.mxu0 0.0
    %615 = vmatpush2.msra.mxu0 0.0
    %616 = vmatprep.subr.mxu0 0.0
    %617 = vmatpush2.msra.mxu0 0.0
    %618 = vmatprep.subr.mxu0 0.0
    %619 = vmatpush2.msra.mxu0 0.0
    %620 = vmatprep.subr.mxu0 0.0
    %621 = vmatpush2.msra.mxu0 0.0
    %622 = vmatprep.mubr.f32.mxu0 0.0
    %623 = vmatmul.mubr.f32.gmra.mxu0 %v556
    %v624 = vpop.f32.mrf.mxu0
    %v625 = vadd.f32 0.0, %v624
    %v626 = vpop.f32.mrf.mxu0
    %627 = vdwg.mxu0
    %628 = vrot.lane.b32.xlu0 %v333, 64
    %v629 = vpop.permute.xlu0 %628
    %v632 = vsel %vm374, %v551, 0
    %634 = vmatprep.subr.mxu0 0.0
    %635 = vmatpush1.msra.mxu0 0.0
    %636 = vmatprep.subr.mxu0 0.0
    %637 = vmatpush1.msra.mxu0 0.0
    %638 = vmatprep.subr.mxu0 0.0
    %639 = vmatpush1.msra.mxu0 0.0
    %640 = vmatprep.subr.mxu0 0.0
    %641 = vmatpush1.msra.mxu0 0.0
    %642 = vmatprep.subr.mxu0 0.0
    %643 = vmatpush1.msra.mxu0 0.0
    %644 = vmatprep.subr.mxu0 0.0
    %645 = vmatpush1.msra.mxu0 0.0
    %646 = vmatprep.subr.mxu0 0.0
    %647 = vmatpush1.msra.mxu0 0.0
    %648 = vmatprep.subr.mxu0 0.0
    %649 = vmatpush1.msra.mxu0 0.0
    %650 = vmatprep.subr.mxu0 0.0
    %651 = vmatpush1.msra.mxu0 0.0
    %652 = vmatprep.subr.mxu0 0.0
    %653 = vmatpush1.msra.mxu0 0.0
    %654 = vmatprep.subr.mxu0 0.0
    %655 = vmatpush1.msra.mxu0 0.0
    %656 = vmatprep.subr.mxu0 0.0
    %657 = vmatpush1.msra.mxu0 0.0
    %658 = vmatprep.subr.mxu0 0.0
    %659 = vmatpush1.msra.mxu0 0.0
    %660 = vmatprep.subr.mxu0 0.0
    %661 = vmatpush1.msra.mxu0 0.0
    %662 = vmatprep.subr.mxu0 0.0
    %663 = vmatpush1.msra.mxu0 0.0
    %664 = vmatprep.subr.mxu0 0.0
    %665 = vmatpush1.msra.mxu0 %v629
    %666 = vmatprep.subr.mxu0 0.0
    %667 = vmatpush2.msra.mxu0 0.0
    %668 = vmatprep.subr.mxu0 0.0
    %669 = vmatpush2.msra.mxu0 0.0
    %670 = vmatprep.subr.mxu0 0.0
    %671 = vmatpush2.msra.mxu0 0.0
    %672 = vmatprep.subr.mxu0 0.0
    %673 = vmatpush2.msra.mxu0 0.0
    %674 = vmatprep.subr.mxu0 0.0
    %675 = vmatpush2.msra.mxu0 0.0
    %676 = vmatprep.subr.mxu0 0.0
    %677 = vmatpush2.msra.mxu0 0.0
    %678 = vmatprep.subr.mxu0 0.0
    %679 = vmatpush2.msra.mxu0 0.0
    %680 = vmatprep.subr.mxu0 0.0
    %681 = vmatpush2.msra.mxu0 0.0
    %682 = vmatprep.subr.mxu0 0.0
    %683 = vmatpush2.msra.mxu0 0.0
    %684 = vmatprep.subr.mxu0 0.0
    %685 = vmatpush2.msra.mxu0 0.0
    %686 = vmatprep.subr.mxu0 0.0
    %687 = vmatpush2.msra.mxu0 0.0
    %688 = vmatprep.subr.mxu0 0.0
    %689 = vmatpush2.msra.mxu0 0.0
    %690 = vmatprep.subr.mxu0 0.0
    %691 = vmatpush2.msra.mxu0 0.0
    %692 = vmatprep.subr.mxu0 0.0
    %693 = vmatpush2.msra.mxu0 0.0
    %694 = vmatprep.subr.mxu0 0.0
    %695 = vmatpush2.msra.mxu0 0.0
    %696 = vmatprep.subr.mxu0 0.0
    %697 = vmatpush2.msra.mxu0 0.0
    %698 = vmatprep.mubr.f32.mxu0 0.0
    %699 = vmatmul.mubr.f32.gmra.mxu0 %v632
    %v700 = vpop.f32.mrf.mxu0
    %v701 = vadd.f32 0.0, %v700
    %v702 = vpop.f32.mrf.mxu0
    %703 = vdwg.mxu0
    %704 = vrot.lane.b32.xlu0 %v328, 120
    %v705 = vpop.permute.xlu0 %704
    %706 = vrot.lane.b32.xlu0 %v328, 88
    %v707 = vpop.permute.xlu0 %706
    %v708 = vsel %vm374, %v705, 0
    %v710 = vsel %vm374, %v707, 0
    %712 = vmatprep.subr.mxu0 0.0
    %713 = vmatpush1.xpose.msra.mxu0 0.0
    %714 = vmatprep.subr.mxu0 0.0
    %715 = vmatpush1.xpose.msra.mxu0 0.0
    %716 = vmatprep.subr.mxu0 0.0
    %717 = vmatpush1.xpose.msra.mxu0 0.0
    %718 = vmatprep.subr.mxu0 0.0
    %719 = vmatpush1.xpose.msra.mxu0 0.0
    %720 = vmatprep.subr.mxu0 0.0
    %721 = vmatpush1.xpose.msra.mxu0 0.0
    %722 = vmatprep.subr.mxu0 0.0
    %723 = vmatpush1.xpose.msra.mxu0 0.0
    %724 = vmatprep.subr.mxu0 0.0
    %725 = vmatpush1.xpose.msra.mxu0 0.0
    %726 = vmatprep.subr.mxu0 0.0
    %727 = vmatpush1.xpose.msra.mxu0 0.0
    %728 = vmatprep.subr.mxu0 0.0
    %729 = vmatpush1.xpose.msra.mxu0 0.0
    %730 = vmatprep.subr.mxu0 0.0
    %731 = vmatpush1.xpose.msra.mxu0 0.0
    %732 = vmatprep.subr.mxu0 0.0
    %733 = vmatpush1.xpose.msra.mxu0 0.0
    %734 = vmatprep.subr.mxu0 0.0
    %735 = vmatpush1.xpose.msra.mxu0 0.0
    %736 = vmatprep.subr.mxu0 0.0
    %737 = vmatpush1.xpose.msra.mxu0 0.0
    %738 = vmatprep.subr.mxu0 0.0
    %739 = vmatpush1.xpose.msra.mxu0 0.0
    %740 = vmatprep.subr.mxu0 0.0
    %741 = vmatpush1.xpose.msra.mxu0 0.0
    %742 = vmatprep.subr.mxu0 0.0
    %743 = vmatpush1.xpose.msra.mxu0 %v710
    %744 = vmatprep.subr.mxu0 0.0
    %745 = vmatpush2.xpose.msra.mxu0 0.0
    %746 = vmatprep.subr.mxu0 0.0
    %747 = vmatpush2.xpose.msra.mxu0 0.0
    %748 = vmatprep.subr.mxu0 0.0
    %749 = vmatpush2.xpose.msra.mxu0 0.0
    %750 = vmatprep.subr.mxu0 0.0
    %751 = vmatpush2.xpose.msra.mxu0 0.0
    %752 = vmatprep.subr.mxu0 0.0
    %753 = vmatpush2.xpose.msra.mxu0 0.0
    %754 = vmatprep.subr.mxu0 0.0
    %755 = vmatpush2.xpose.msra.mxu0 0.0
    %756 = vmatprep.subr.mxu0 0.0
    %757 = vmatpush2.xpose.msra.mxu0 0.0
    %758 = vmatprep.subr.mxu0 0.0
    %759 = vmatpush2.xpose.msra.mxu0 0.0
    %760 = vmatprep.subr.mxu0 0.0
    %761 = vmatpush2.xpose.msra.mxu0 0.0
    %762 = vmatprep.subr.mxu0 0.0
    %763 = vmatpush2.xpose.msra.mxu0 0.0
    %764 = vmatprep.subr.mxu0 0.0
    %765 = vmatpush2.xpose.msra.mxu0 0.0
    %766 = vmatprep.subr.mxu0 0.0
    %767 = vmatpush2.xpose.msra.mxu0 0.0
    %768 = vmatprep.subr.mxu0 0.0
    %769 = vmatpush2.xpose.msra.mxu0 0.0
    %770 = vmatprep.subr.mxu0 0.0
    %771 = vmatpush2.xpose.msra.mxu0 0.0
    %772 = vmatprep.subr.mxu0 0.0
    %773 = vmatpush2.xpose.msra.mxu0 0.0
    %774 = vmatprep.subr.mxu0 0.0
    %775 = vmatpush2.xpose.msra.mxu0 0.0
    %776 = vmatprep.mubr.f32.mxu0 0.0
    %777 = vmatmul.mubr.f32.gmra.mxu0 %v708
    %v778 = vpop.f32.mrf.mxu0
    %v779 = vadd.f32 0.0, %v778
    %v780 = vpop.f32.mrf.mxu0
    %781 = vdwg.mxu0
    %782 = vrot.lane.b32.xlu0 %v333, 120
    %v783 = vpop.permute.xlu0 %782
    %784 = vrot.lane.b32.xlu0 %v333, 88
    %v785 = vpop.permute.xlu0 %784
    %v786 = vsel %vm374, %v783, 0
    %v788 = vsel %vm374, %v785, 0
    %790 = vmatprep.subr.mxu0 0.0
    %791 = vmatpush1.xpose.msra.mxu0 0.0
    %792 = vmatprep.subr.mxu0 0.0
    %793 = vmatpush1.xpose.msra.mxu0 0.0
    %794 = vmatprep.subr.mxu0 0.0
    %795 = vmatpush1.xpose.msra.mxu0 0.0
    %796 = vmatprep.subr.mxu0 0.0
    %797 = vmatpush1.xpose.msra.mxu0 0.0
    %798 = vmatprep.subr.mxu0 0.0
    %799 = vmatpush1.xpose.msra.mxu0 0.0
    %800 = vmatprep.subr.mxu0 0.0
    %801 = vmatpush1.xpose.msra.mxu0 0.0
    %802 = vmatprep.subr.mxu0 0.0
    %803 = vmatpush1.xpose.msra.mxu0 0.0
    %804 = vmatprep.subr.mxu0 0.0
    %805 = vmatpush1.xpose.msra.mxu0 0.0
    %806 = vmatprep.subr.mxu0 0.0
    %807 = vmatpush1.xpose.msra.mxu0 0.0
    %808 = vmatprep.subr.mxu0 0.0
    %809 = vmatpush1.xpose.msra.mxu0 0.0
    %810 = vmatprep.subr.mxu0 0.0
    %811 = vmatpush1.xpose.msra.mxu0 0.0
    %812 = vmatprep.subr.mxu0 0.0
    %813 = vmatpush1.xpose.msra.mxu0 0.0
    %814 = vmatprep.subr.mxu0 0.0
    %815 = vmatpush1.xpose.msra.mxu0 0.0
    %816 = vmatprep.subr.mxu0 0.0
    %817 = vmatpush1.xpose.msra.mxu0 0.0
    %818 = vmatprep.subr.mxu0 0.0
    %819 = vmatpush1.xpose.msra.mxu0 0.0
    %820 = vmatprep.subr.mxu0 0.0
    %821 = vmatpush1.xpose.msra.mxu0 %v788
    %822 = vmatprep.subr.mxu0 0.0
    %823 = vmatpush2.xpose.msra.mxu0 0.0
    %824 = vmatprep.subr.mxu0 0.0
    %825 = vmatpush2.xpose.msra.mxu0 0.0
    %826 = vmatprep.subr.mxu0 0.0
    %827 = vmatpush2.xpose.msra.mxu0 0.0
    %828 = vmatprep.subr.mxu0 0.0
    %829 = vmatpush2.xpose.msra.mxu0 0.0
    %830 = vmatprep.subr.mxu0 0.0
    %831 = vmatpush2.xpose.msra.mxu0 0.0
    %832 = vmatprep.subr.mxu0 0.0
    %833 = vmatpush2.xpose.msra.mxu0 0.0
    %834 = vmatprep.subr.mxu0 0.0
    %835 = vmatpush2.xpose.msra.mxu0 0.0
    %836 = vmatprep.subr.mxu0 0.0
    %837 = vmatpush2.xpose.msra.mxu0 0.0
    %838 = vmatprep.subr.mxu0 0.0
    %839 = vmatpush2.xpose.msra.mxu0 0.0
    %840 = vmatprep.subr.mxu0 0.0
    %841 = vmatpush2.xpose.msra.mxu0 0.0
    %842 = vmatprep.subr.mxu0 0.0
    %843 = vmatpush2.xpose.msra.mxu0 0.0
    %844 = vmatprep.subr.mxu0 0.0
    %845 = vmatpush2.xpose.msra.mxu0 0.0
    %846 = vmatprep.subr.mxu0 0.0
    %847 = vmatpush2.xpose.msra.mxu0 0.0
    %848 = vmatprep.subr.mxu0 0.0
    %849 = vmatpush2.xpose.msra.mxu0 0.0
    %850 = vmatprep.subr.mxu0 0.0
    %851 = vmatpush2.xpose.msra.mxu0 0.0
    %852 = vmatprep.subr.mxu0 0.0
    %853 = vmatpush2.xpose.msra.mxu0 0.0
    %854 = vmatprep.mubr.f32.mxu0 0.0
    %855 = vmatmul.mubr.f32.gmra.mxu0 %v786
    %v856 = vpop.f32.mrf.mxu0
    %v857 = vadd.f32 0.0, %v856
    %v858 = vpop.f32.mrf.mxu0
    %859 = vdwg.mxu0
    %v860 = vmul.f32 %v779, 0.35355338
    %v861 = vmul.f32 %v857, 0.35355338
    %v862 = vadd.f32 %v860, %v364
    %v863 = vadd.f32 %v861, %v368
    %v864 = vsel %vm374, %v862, -inf
    %865 = vmax.xlane.f32.xlu0 %v864
    %v866 = vpop.xlane.xlu0 %865
    %v867 = vsel %vm374, %v863, -inf
    %868 = vmax.xlane.f32.xlu0 %v867
    %v869 = vpop.xlane.xlu0 %868
    %v870 = vsub.f32 %v862, %v866
    %v871 = vsub.f32 %v863, %v869
    %v872 = vmul.f32 %v870, 1.442695
    %v873 = vpow.pop %v872
    %v874 = vmul.f32 %v871, 1.442695
    %v875 = vpow.pop %v874
    %v876 = vsel %vm374, %v873, 0.0
    %877 = vadd.xlane.f32.xlu0 %v876
    %v878 = vpop.xlane.xlu0 %877
    %v879 = vsel %vm374, %v875, 0.0
    %880 = vadd.xlane.f32.xlu0 %v879
    %v881 = vpop.xlane.xlu0 %880
    %v882 = vrcp.pop %v878
    %v883 = vrcp.pop %v881
    %v884 = vmul.f32 %v873, %v882
    %v885 = vmul.f32 %v875, %v883
    %886 = vrot.lane.b32.xlu0 %v328, 56
    %v887 = vpop.permute.xlu0 %886
    %v890 = vsel %vm374, %v884, 0
    %892 = vmatprep.subr.mxu0 0.0
    %893 = vmatpush1.msra.mxu0 0.0
    %894 = vmatprep.subr.mxu0 0.0
    %895 = vmatpush1.msra.mxu0 0.0
    %896 = vmatprep.subr.mxu0 0.0
    %897 = vmatpush1.msra.mxu0 0.0
    %898 = vmatprep.subr.mxu0 0.0
    %899 = vmatpush1.msra.mxu0 0.0
    %900 = vmatprep.subr.mxu0 0.0
    %901 = vmatpush1.msra.mxu0 0.0
    %902 = vmatprep.subr.mxu0 0.0
    %903 = vmatpush1.msra.mxu0 0.0
    %904 = vmatprep.subr.mxu0 0.0
    %905 = vmatpush1.msra.mxu0 0.0
    %906 = vmatprep.subr.mxu0 0.0
    %907 = vmatpush1.msra.mxu0 0.0
    %908 = vmatprep.subr.mxu0 0.0
    %909 = vmatpush1.msra.mxu0 0.0
    %910 = vmatprep.subr.mxu0 0.0
    %911 = vmatpush1.msra.mxu0 0.0
    %912 = vmatprep.subr.mxu0 0.0
    %913 = vmatpush1.msra.mxu0 0.0
    %914 = vmatprep.subr.mxu0 0.0
    %915 = vmatpush1.msra.mxu0 0.0
    %916 = vmatprep.subr.mxu0 0.0
    %917 = vmatpush1.msra.mxu0 0.0
    %918 = vmatprep.subr.mxu0 0.0
    %919 = vmatpush1.msra.mxu0 0.0
    %920 = vmatprep.subr.mxu0 0.0
    %921 = vmatpush1.msra.mxu0 0.0
    %922 = vmatprep.subr.mxu0 0.0
    %923 = vmatpush1.msra.mxu0 %v887
    %924 = vmatprep.subr.mxu0 0.0
    %925 = vmatpush2.msra.mxu0 0.0
    %926 = vmatprep.subr.mxu0 0.0
    %927 = vmatpush2.msra.mxu0 0.0
    %928 = vmatprep.subr.mxu0 0.0
    %929 = vmatpush2.msra.mxu0 0.0
    %930 = vmatprep.subr.mxu0 0.0
    %931 = vmatpush2.msra.mxu0 0.0
    %932 = vmatprep.subr.mxu0 0.0
    %933 = vmatpush2.msra.mxu0 0.0
    %934 = vmatprep.subr.mxu0 0.0
    %935 = vmatpush2.msra.mxu0 0.0
    %936 = vmatprep.subr.mxu0 0.0
    %937 = vmatpush2.msra.mxu0 0.0
    %938 = vmatprep.subr.mxu0 0.0
    %939 = vmatpush2.msra.mxu0 0.0
    %940 = vmatprep.subr.mxu0 0.0
    %941 = vmatpush2.msra.mxu0 0.0
    %942 = vmatprep.subr.mxu0 0.0
    %943 = vmatpush2.msra.mxu0 0.0
    %944 = vmatprep.subr.mxu0 0.0
    %945 = vmatpush2.msra.mxu0 0.0
    %946 = vmatprep.subr.mxu0 0.0
    %947 = vmatpush2.msra.mxu0 0.0
    %948 = vmatprep.subr.mxu0 0.0
    %949 = vmatpush2.msra.mxu0 0.0
    %950 = vmatprep.subr.mxu0 0.0
    %951 = vmatpush2.msra.mxu0 0.0
    %952 = vmatprep.subr.mxu0 0.0
    %953 = vmatpush2.msra.mxu0 0.0
    %954 = vmatprep.subr.mxu0 0.0
    %955 = vmatpush2.msra.mxu0 0.0
    %956 = vmatprep.mubr.f32.mxu0 0.0
    %957 = vmatmul.mubr.f32.gmra.mxu0 %v890
    %v958 = vpop.f32.mrf.mxu0
    %v959 = vadd.f32 0.0, %v958
    %v960 = vpop.f32.mrf.mxu0
    %961 = vdwg.mxu0
    %962 = vrot.lane.b32.xlu0 %v333, 56
    %v963 = vpop.permute.xlu0 %962
    %v966 = vsel %vm374, %v885, 0
    %968 = vmatprep.subr.mxu0 0.0
    %969 = vmatpush1.msra.mxu0 0.0
    %970 = vmatprep.subr.mxu0 0.0
    %971 = vmatpush1.msra.mxu0 0.0
    %972 = vmatprep.subr.mxu0 0.0
    %973 = vmatpush1.msra.mxu0 0.0
    %974 = vmatprep.subr.mxu0 0.0
    %975 = vmatpush1.msra.mxu0 0.0
    %976 = vmatprep.subr.mxu0 0.0
    %977 = vmatpush1.msra.mxu0 0.0
    %978 = vmatprep.subr.mxu0 0.0
    %979 = vmatpush1.msra.mxu0 0.0
    %980 = vmatprep.subr.mxu0 0.0
    %981 = vmatpush1.msra.mxu0 0.0
    %982 = vmatprep.subr.mxu0 0.0
    %983 = vmatpush1.msra.mxu0 0.0
    %984 = vmatprep.subr.mxu0 0.0
    %985 = vmatpush1.msra.mxu0 0.0
    %986 = vmatprep.subr.mxu0 0.0
    %987 = vmatpush1.msra.mxu0 0.0
    %988 = vmatprep.subr.mxu0 0.0
    %989 = vmatpush1.msra.mxu0 0.0
    %990 = vmatprep.subr.mxu0 0.0
    %991 = vmatpush1.msra.mxu0 0.0
    %992 = vmatprep.subr.mxu0 0.0
    %993 = vmatpush1.msra.mxu0 0.0
    %994 = vmatprep.subr.mxu0 0.0
    %995 = vmatpush1.msra.mxu0 0.0
    %996 = vmatprep.subr.mxu0 0.0
    %997 = vmatpush1.msra.mxu0 0.0
    %998 = vmatprep.subr.mxu0 0.0
    %999 = vmatpush1.msra.mxu0 %v963
    %1000 = vmatprep.subr.mxu0 0.0
    %1001 = vmatpush2.msra.mxu0 0.0
    %1002 = vmatprep.subr.mxu0 0.0
    %1003 = vmatpush2.msra.mxu0 0.0
    %1004 = vmatprep.subr.mxu0 0.0
    %1005 = vmatpush2.msra.mxu0 0.0
    %1006 = vmatprep.subr.mxu0 0.0
    %1007 = vmatpush2.msra.mxu0 0.0
    %1008 = vmatprep.subr.mxu0 0.0
    %1009 = vmatpush2.msra.mxu0 0.0
    %1010 = vmatprep.subr.mxu0 0.0
    %1011 = vmatpush2.msra.mxu0 0.0
    %1012 = vmatprep.subr.mxu0 0.0
    %1013 = vmatpush2.msra.mxu0 0.0
    %1014 = vmatprep.subr.mxu0 0.0
    %1015 = vmatpush2.msra.mxu0 0.0
    %1016 = vmatprep.subr.mxu0 0.0
    %1017 = vmatpush2.msra.mxu0 0.0
    %1018 = vmatprep.subr.mxu0 0.0
    %1019 = vmatpush2.msra.mxu0 0.0
    %1020 = vmatprep.subr.mxu0 0.0
    %1021 = vmatpush2.msra.mxu0 0.0
    %1022 = vmatprep.subr.mxu0 0.0
    %1023 = vmatpush2.msra.mxu0 0.0
    %1024 = vmatprep.subr.mxu0 0.0
    %1025 = vmatpush2.msra.mxu0 0.0
    %1026 = vmatprep.subr.mxu0 0.0
    %1027 = vmatpush2.msra.mxu0 0.0
    %1028 = vmatprep.subr.mxu0 0.0
    %1029 = vmatpush2.msra.mxu0 0.0
    %1030 = vmatprep.subr.mxu0 0.0
    %1031 = vmatpush2.msra.mxu0 0.0
    %1032 = vmatprep.mubr.f32.mxu0 0.0
    %1033 = vmatmul.mubr.f32.gmra.mxu0 %v966
    %v1034 = vpop.f32.mrf.mxu0
    %v1035 = vadd.f32 0.0, %v1034
    %v1036 = vpop.f32.mrf.mxu0
    %1037 = vdwg.mxu0
    %1038 = vrot.lane.b32.xlu0 %v328, 112
    %v1039 = vpop.permute.xlu0 %1038
    %1040 = vrot.lane.b32.xlu0 %v328, 80
    %v1041 = vpop.permute.xlu0 %1040
    %v1042 = vsel %vm374, %v1039, 0
    %v1044 = vsel %vm374, %v1041, 0
    %1046 = vmatprep.subr.mxu0 0.0
    %1047 = vmatpush1.xpose.msra.mxu0 0.0
    %1048 = vmatprep.subr.mxu0 0.0
    %1049 = vmatpush1.xpose.msra.mxu0 0.0
    %1050 = vmatprep.subr.mxu0 0.0
    %1051 = vmatpush1.xpose.msra.mxu0 0.0
    %1052 = vmatprep.subr.mxu0 0.0
    %1053 = vmatpush1.xpose.msra.mxu0 0.0
    %1054 = vmatprep.subr.mxu0 0.0
    %1055 = vmatpush1.xpose.msra.mxu0 0.0
    %1056 = vmatprep.subr.mxu0 0.0
    %1057 = vmatpush1.xpose.msra.mxu0 0.0
    %1058 = vmatprep.subr.mxu0 0.0
    %1059 = vmatpush1.xpose.msra.mxu0 0.0
    %1060 = vmatprep.subr.mxu0 0.0
    %1061 = vmatpush1.xpose.msra.mxu0 0.0
    %1062 = vmatprep.subr.mxu0 0.0
    %1063 = vmatpush1.xpose.msra.mxu0 0.0
    %1064 = vmatprep.subr.mxu0 0.0
    %1065 = vmatpush1.xpose.msra.mxu0 0.0
    %1066 = vmatprep.subr.mxu0 0.0
    %1067 = vmatpush1.xpose.msra.mxu0 0.0
    %1068 = vmatprep.subr.mxu0 0.0
    %1069 = vmatpush1.xpose.msra.mxu0 0.0
    %1070 = vmatprep.subr.mxu0 0.0
    %1071 = vmatpush1.xpose.msra.mxu0 0.0
    %1072 = vmatprep.subr.mxu0 0.0
    %1073 = vmatpush1.xpose.msra.mxu0 0.0
    %1074 = vmatprep.subr.mxu0 0.0
    %1075 = vmatpush1.xpose.msra.mxu0 0.0
    %1076 = vmatprep.subr.mxu0 0.0
    %1077 = vmatpush1.xpose.msra.mxu0 %v1044
    %1078 = vmatprep.subr.mxu0 0.0
    %1079 = vmatpush2.xpose.msra.mxu0 0.0
    %1080 = vmatprep.subr.mxu0 0.0
    %1081 = vmatpush2.xpose.msra.mxu0 0.0
    %1082 = vmatprep.subr.mxu0 0.0
    %1083 = vmatpush2.xpose.msra.mxu0 0.0
    %1084 = vmatprep.subr.mxu0 0.0
    %1085 = vmatpush2.xpose.msra.mxu0 0.0
    %1086 = vmatprep.subr.mxu0 0.0
    %1087 = vmatpush2.xpose.msra.mxu0 0.0
    %1088 = vmatprep.subr.mxu0 0.0
    %1089 = vmatpush2.xpose.msra.mxu0 0.0
    %1090 = vmatprep.subr.mxu0 0.0
    %1091 = vmatpush2.xpose.msra.mxu0 0.0
    %1092 = vmatprep.subr.mxu0 0.0
    %1093 = vmatpush2.xpose.msra.mxu0 0.0
    %1094 = vmatprep.subr.mxu0 0.0
    %1095 = vmatpush2.xpose.msra.mxu0 0.0
    %1096 = vmatprep.subr.mxu0 0.0
    %1097 = vmatpush2.xpose.msra.mxu0 0.0
    %1098 = vmatprep.subr.mxu0 0.0
    %1099 = vmatpush2.xpose.msra.mxu0 0.0
    %1100 = vmatprep.subr.mxu0 0.0
    %1101 = vmatpush2.xpose.msra.mxu0 0.0
    %1102 = vmatprep.subr.mxu0 0.0
    %1103 = vmatpush2.xpose.msra.mxu0 0.0
    %1104 = vmatprep.subr.mxu0 0.0
    %1105 = vmatpush2.xpose.msra.mxu0 0.0
    %1106 = vmatprep.subr.mxu0 0.0
    %1107 = vmatpush2.xpose.msra.mxu0 0.0
    %1108 = vmatprep.subr.mxu0 0.0
    %1109 = vmatpush2.xpose.msra.mxu0 0.0
    %1110 = vmatprep.mubr.f32.mxu0 0.0
    %1111 = vmatmul.mubr.f32.gmra.mxu0 %v1042
    %v1112 = vpop.f32.mrf.mxu0
    %v1113 = vadd.f32 0.0, %v1112
    %v1114 = vpop.f32.mrf.mxu0
    %1115 = vdwg.mxu0
    %1116 = vrot.lane.b32.xlu0 %v333, 112
    %v1117 = vpop.permute.xlu0 %1116
    %1118 = vrot.lane.b32.xlu0 %v333, 80
    %v1119 = vpop.permute.xlu0 %1118
    %v1120 = vsel %vm374, %v1117, 0
    %v1122 = vsel %vm374, %v1119, 0
    %1124 = vmatprep.subr.mxu0 0.0
    %1125 = vmatpush1.xpose.msra.mxu0 0.0
    %1126 = vmatprep.subr.mxu0 0.0
    %1127 = vmatpush1.xpose.msra.mxu0 0.0
    %1128 = vmatprep.subr.mxu0 0.0
    %1129 = vmatpush1.xpose.msra.mxu0 0.0
    %1130 = vmatprep.subr.mxu0 0.0
    %1131 = vmatpush1.xpose.msra.mxu0 0.0
    %1132 = vmatprep.subr.mxu0 0.0
    %1133 = vmatpush1.xpose.msra.mxu0 0.0
    %1134 = vmatprep.subr.mxu0 0.0
    %1135 = vmatpush1.xpose.msra.mxu0 0.0
    %1136 = vmatprep.subr.mxu0 0.0
    %1137 = vmatpush1.xpose.msra.mxu0 0.0
    %1138 = vmatprep.subr.mxu0 0.0
    %1139 = vmatpush1.xpose.msra.mxu0 0.0
    %1140 = vmatprep.subr.mxu0 0.0
    %1141 = vmatpush1.xpose.msra.mxu0 0.0
    %1142 = vmatprep.subr.mxu0 0.0
    %1143 = vmatpush1.xpose.msra.mxu0 0.0
    %1144 = vmatprep.subr.mxu0 0.0
    %1145 = vmatpush1.xpose.msra.mxu0 0.0
    %1146 = vmatprep.subr.mxu0 0.0
    %1147 = vmatpush1.xpose.msra.mxu0 0.0
    %1148 = vmatprep.subr.mxu0 0.0
    %1149 = vmatpush1.xpose.msra.mxu0 0.0
    %1150 = vmatprep.subr.mxu0 0.0
    %1151 = vmatpush1.xpose.msra.mxu0 0.0
    %1152 = vmatprep.subr.mxu0 0.0
    %1153 = vmatpush1.xpose.msra.mxu0 0.0
    %1154 = vmatprep.subr.mxu0 0.0
    %1155 = vmatpush1.xpose.msra.mxu0 %v1122
    %1156 = vmatprep.subr.mxu0 0.0
    %1157 = vmatpush2.xpose.msra.mxu0 0.0
    %1158 = vmatprep.subr.mxu0 0.0
    %1159 = vmatpush2.xpose.msra.mxu0 0.0
    %1160 = vmatprep.subr.mxu0 0.0
    %1161 = vmatpush2.xpose.msra.mxu0 0.0
    %1162 = vmatprep.subr.mxu0 0.0
    %1163 = vmatpush2.xpose.msra.mxu0 0.0
    %1164 = vmatprep.subr.mxu0 0.0
    %1165 = vmatpush2.xpose.msra.mxu0 0.0
    %1166 = vmatprep.subr.mxu0 0.0
    %1167 = vmatpush2.xpose.msra.mxu0 0.0
    %1168 = vmatprep.subr.mxu0 0.0
    %1169 = vmatpush2.xpose.msra.mxu0 0.0
    %1170 = vmatprep.subr.mxu0 0.0
    %1171 = vmatpush2.xpose.msra.mxu0 0.0
    %1172 = vmatprep.subr.mxu0 0.0
    %1173 = vmatpush2.xpose.msra.mxu0 0.0
    %1174 = vmatprep.subr.mxu0 0.0
    %1175 = vmatpush2.xpose.msra.mxu0 0.0
    %1176 = vmatprep.subr.mxu0 0.0
    %1177 = vmatpush2.xpose.msra.mxu0 0.0
    %1178 = vmatprep.subr.mxu0 0.0
    %1179 = vmatpush2.xpose.msra.mxu0 0.0
    %1180 = vmatprep.subr.mxu0 0.0
    %1181 = vmatpush2.xpose.msra.mxu0 0.0
    %1182 = vmatprep.subr.mxu0 0.0
    %1183 = vmatpush2.xpose.msra.mxu0 0.0
    %1184 = vmatprep.subr.mxu0 0.0
    %1185 = vmatpush2.xpose.msra.mxu0 0.0
    %1186 = vmatprep.subr.mxu0 0.0
    %1187 = vmatpush2.xpose.msra.mxu0 0.0
    %1188 = vmatprep.mubr.f32.mxu0 0.0
    %1189 = vmatmul.mubr.f32.gmra.mxu0 %v1120
    %v1190 = vpop.f32.mrf.mxu0
    %v1191 = vadd.f32 0.0, %v1190
    %v1192 = vpop.f32.mrf.mxu0
    %1193 = vdwg.mxu0
    %v1194 = vmul.f32 %v1113, 0.35355338
    %v1195 = vmul.f32 %v1191, 0.35355338
    %v1196 = vadd.f32 %v1194, %v364
    %v1197 = vadd.f32 %v1195, %v368
    %v1198 = vsel %vm374, %v1196, -inf
    %1199 = vmax.xlane.f32.xlu0 %v1198
    %v1200 = vpop.xlane.xlu0 %1199
    %v1201 = vsel %vm374, %v1197, -inf
    %1202 = vmax.xlane.f32.xlu0 %v1201
    %v1203 = vpop.xlane.xlu0 %1202
    %v1204 = vsub.f32 %v1196, %v1200
    %v1205 = vsub.f32 %v1197, %v1203
    %v1206 = vmul.f32 %v1204, 1.442695
    %v1207 = vpow.pop %v1206
    %v1208 = vmul.f32 %v1205, 1.442695
    %v1209 = vpow.pop %v1208
    %v1210 = vsel %vm374, %v1207, 0.0
    %1211 = vadd.xlane.f32.xlu0 %v1210
    %v1212 = vpop.xlane.xlu0 %1211
    %v1213 = vsel %vm374, %v1209, 0.0
    %1214 = vadd.xlane.f32.xlu0 %v1213
    %v1215 = vpop.xlane.xlu0 %1214
    %v1216 = vrcp.pop %v1212
    %v1217 = vrcp.pop %v1215
    %v1218 = vmul.f32 %v1207, %v1216
    %v1219 = vmul.f32 %v1209, %v1217
    %1220 = vrot.lane.b32.xlu0 %v328, 48
    %v1221 = vpop.permute.xlu0 %1220
    %v1224 = vsel %vm374, %v1218, 0
    %1226 = vmatprep.subr.mxu0 0.0
    %1227 = vmatpush1.msra.mxu0 0.0
    %1228 = vmatprep.subr.mxu0 0.0
    %1229 = vmatpush1.msra.mxu0 0.0
    %1230 = vmatprep.subr.mxu0 0.0
    %1231 = vmatpush1.msra.mxu0 0.0
    %1232 = vmatprep.subr.mxu0 0.0
    %1233 = vmatpush1.msra.mxu0 0.0
    %1234 = vmatprep.subr.mxu0 0.0
    %1235 = vmatpush1.msra.mxu0 0.0
    %1236 = vmatprep.subr.mxu0 0.0
    %1237 = vmatpush1.msra.mxu0 0.0
    %1238 = vmatprep.subr.mxu0 0.0
    %1239 = vmatpush1.msra.mxu0 0.0
    %1240 = vmatprep.subr.mxu0 0.0
    %1241 = vmatpush1.msra.mxu0 0.0
    %1242 = vmatprep.subr.mxu0 0.0
    %1243 = vmatpush1.msra.mxu0 0.0
    %1244 = vmatprep.subr.mxu0 0.0
    %1245 = vmatpush1.msra.mxu0 0.0
    %1246 = vmatprep.subr.mxu0 0.0
    %1247 = vmatpush1.msra.mxu0 0.0
    %1248 = vmatprep.subr.mxu0 0.0
    %1249 = vmatpush1.msra.mxu0 0.0
    %1250 = vmatprep.subr.mxu0 0.0
    %1251 = vmatpush1.msra.mxu0 0.0
    %1252 = vmatprep.subr.mxu0 0.0
    %1253 = vmatpush1.msra.mxu0 0.0
    %1254 = vmatprep.subr.mxu0 0.0
    %1255 = vmatpush1.msra.mxu0 0.0
    %1256 = vmatprep.subr.mxu0 0.0
    %1257 = vmatpush1.msra.mxu0 %v1221
    %1258 = vmatprep.subr.mxu0 0.0
    %1259 = vmatpush2.msra.mxu0 0.0
    %1260 = vmatprep.subr.mxu0 0.0
    %1261 = vmatpush2.msra.mxu0 0.0
    %1262 = vmatprep.subr.mxu0 0.0
    %1263 = vmatpush2.msra.mxu0 0.0
    %1264 = vmatprep.subr.mxu0 0.0
    %1265 = vmatpush2.msra.mxu0 0.0
    %1266 = vmatprep.subr.mxu0 0.0
    %1267 = vmatpush2.msra.mxu0 0.0
    %1268 = vmatprep.subr.mxu0 0.0
    %1269 = vmatpush2.msra.mxu0 0.0
    %1270 = vmatprep.subr.mxu0 0.0
    %1271 = vmatpush2.msra.mxu0 0.0
    %1272 = vmatprep.subr.mxu0 0.0
    %1273 = vmatpush2.msra.mxu0 0.0
    %1274 = vmatprep.subr.mxu0 0.0
    %1275 = vmatpush2.msra.mxu0 0.0
    %1276 = vmatprep.subr.mxu0 0.0
    %1277 = vmatpush2.msra.mxu0 0.0
    %1278 = vmatprep.subr.mxu0 0.0
    %1279 = vmatpush2.msra.mxu0 0.0
    %1280 = vmatprep.subr.mxu0 0.0
    %1281 = vmatpush2.msra.mxu0 0.0
    %1282 = vmatprep.subr.mxu0 0.0
    %1283 = vmatpush2.msra.mxu0 0.0
    %1284 = vmatprep.subr.mxu0 0.0
    %1285 = vmatpush2.msra.mxu0 0.0
    %1286 = vmatprep.subr.mxu0 0.0
    %1287 = vmatpush2.msra.mxu0 0.0
    %1288 = vmatprep.subr.mxu0 0.0
    %1289 = vmatpush2.msra.mxu0 0.0
    %1290 = vmatprep.mubr.f32.mxu0 0.0
    %1291 = vmatmul.mubr.f32.gmra.mxu0 %v1224
    %v1292 = vpop.f32.mrf.mxu0
    %v1293 = vadd.f32 0.0, %v1292
    %v1294 = vpop.f32.mrf.mxu0
    %1295 = vdwg.mxu0
    %1296 = vrot.lane.b32.xlu0 %v333, 48
    %v1297 = vpop.permute.xlu0 %1296
    %v1300 = vsel %vm374, %v1219, 0
    %1302 = vmatprep.subr.mxu0 0.0
    %1303 = vmatpush1.msra.mxu0 0.0
    %1304 = vmatprep.subr.mxu0 0.0
    %1305 = vmatpush1.msra.mxu0 0.0
    %1306 = vmatprep.subr.mxu0 0.0
    %1307 = vmatpush1.msra.mxu0 0.0
    %1308 = vmatprep.subr.mxu0 0.0
    %1309 = vmatpush1.msra.mxu0 0.0
    %1310 = vmatprep.subr.mxu0 0.0
    %1311 = vmatpush1.msra.mxu0 0.0
    %1312 = vmatprep.subr.mxu0 0.0
    %1313 = vmatpush1.msra.mxu0 0.0
    %1314 = vmatprep.subr.mxu0 0.0
    %1315 = vmatpush1.msra.mxu0 0.0
    %1316 = vmatprep.subr.mxu0 0.0
    %1317 = vmatpush1.msra.mxu0 0.0
    %1318 = vmatprep.subr.mxu0 0.0
    %1319 = vmatpush1.msra.mxu0 0.0
    %1320 = vmatprep.subr.mxu0 0.0
    %1321 = vmatpush1.msra.mxu0 0.0
    %1322 = vmatprep.subr.mxu0 0.0
    %1323 = vmatpush1.msra.mxu0 0.0
    %1324 = vmatprep.subr.mxu0 0.0
    %1325 = vmatpush1.msra.mxu0 0.0
    %1326 = vmatprep.subr.mxu0 0.0
    %1327 = vmatpush1.msra.mxu0 0.0
    %1328 = vmatprep.subr.mxu0 0.0
    %1329 = vmatpush1.msra.mxu0 0.0
    %1330 = vmatprep.subr.mxu0 0.0
    %1331 = vmatpush1.msra.mxu0 0.0
    %1332 = vmatprep.subr.mxu0 0.0
    %1333 = vmatpush1.msra.mxu0 %v1297
    %1334 = vmatprep.subr.mxu0 0.0
    %1335 = vmatpush2.msra.mxu0 0.0
    %1336 = vmatprep.subr.mxu0 0.0
    %1337 = vmatpush2.msra.mxu0 0.0
    %1338 = vmatprep.subr.mxu0 0.0
    %1339 = vmatpush2.msra.mxu0 0.0
    %1340 = vmatprep.subr.mxu0 0.0
    %1341 = vmatpush2.msra.mxu0 0.0
    %1342 = vmatprep.subr.mxu0 0.0
    %1343 = vmatpush2.msra.mxu0 0.0
    %1344 = vmatprep.subr.mxu0 0.0
    %1345 = vmatpush2.msra.mxu0 0.0
    %1346 = vmatprep.subr.mxu0 0.0
    %1347 = vmatpush2.msra.mxu0 0.0
    %1348 = vmatprep.subr.mxu0 0.0
    %1349 = vmatpush2.msra.mxu0 0.0
    %1350 = vmatprep.subr.mxu0 0.0
    %1351 = vmatpush2.msra.mxu0 0.0
    %1352 = vmatprep.subr.mxu0 0.0
    %1353 = vmatpush2.msra.mxu0 0.0
    %1354 = vmatprep.subr.mxu0 0.0
    %1355 = vmatpush2.msra.mxu0 0.0
    %1356 = vmatprep.subr.mxu0 0.0
    %1357 = vmatpush2.msra.mxu0 0.0
    %1358 = vmatprep.subr.mxu0 0.0
    %1359 = vmatpush2.msra.mxu0 0.0
    %1360 = vmatprep.subr.mxu0 0.0
    %1361 = vmatpush2.msra.mxu0 0.0
    %1362 = vmatprep.subr.mxu0 0.0
    %1363 = vmatpush2.msra.mxu0 0.0
    %1364 = vmatprep.subr.mxu0 0.0
    %1365 = vmatpush2.msra.mxu0 0.0
    %1366 = vmatprep.mubr.f32.mxu0 0.0
    %1367 = vmatmul.mubr.f32.gmra.mxu0 %v1300
    %v1368 = vpop.f32.mrf.mxu0
    %v1369 = vadd.f32 0.0, %v1368
    %v1370 = vpop.f32.mrf.mxu0
    %1371 = vdwg.mxu0
    %1372 = vrot.lane.b32.xlu0 %v328, 104
    %v1373 = vpop.permute.xlu0 %1372
    %1374 = vrot.lane.b32.xlu0 %v328, 72
    %v1375 = vpop.permute.xlu0 %1374
    %v1376 = vsel %vm374, %v1373, 0
    %v1378 = vsel %vm374, %v1375, 0
    %1380 = vmatprep.subr.mxu0 0.0
    %1381 = vmatpush1.xpose.msra.mxu0 0.0
    %1382 = vmatprep.subr.mxu0 0.0
    %1383 = vmatpush1.xpose.msra.mxu0 0.0
    %1384 = vmatprep.subr.mxu0 0.0
    %1385 = vmatpush1.xpose.msra.mxu0 0.0
    %1386 = vmatprep.subr.mxu0 0.0
    %1387 = vmatpush1.xpose.msra.mxu0 0.0
    %1388 = vmatprep.subr.mxu0 0.0
    %1389 = vmatpush1.xpose.msra.mxu0 0.0
    %1390 = vmatprep.subr.mxu0 0.0
    %1391 = vmatpush1.xpose.msra.mxu0 0.0
    %1392 = vmatprep.subr.mxu0 0.0
    %1393 = vmatpush1.xpose.msra.mxu0 0.0
    %1394 = vmatprep.subr.mxu0 0.0
    %1395 = vmatpush1.xpose.msra.mxu0 0.0
    %1396 = vmatprep.subr.mxu0 0.0
    %1397 = vmatpush1.xpose.msra.mxu0 0.0
    %1398 = vmatprep.subr.mxu0 0.0
    %1399 = vmatpush1.xpose.msra.mxu0 0.0
    %1400 = vmatprep.subr.mxu0 0.0
    %1401 = vmatpush1.xpose.msra.mxu0 0.0
    %1402 = vmatprep.subr.mxu0 0.0
    %1403 = vmatpush1.xpose.msra.mxu0 0.0
    %1404 = vmatprep.subr.mxu0 0.0
    %1405 = vmatpush1.xpose.msra.mxu0 0.0
    %1406 = vmatprep.subr.mxu0 0.0
    %1407 = vmatpush1.xpose.msra.mxu0 0.0
    %1408 = vmatprep.subr.mxu0 0.0
    %1409 = vmatpush1.xpose.msra.mxu0 0.0
    %1410 = vmatprep.subr.mxu0 0.0
    %1411 = vmatpush1.xpose.msra.mxu0 %v1378
    %1412 = vmatprep.subr.mxu0 0.0
    %1413 = vmatpush2.xpose.msra.mxu0 0.0
    %1414 = vmatprep.subr.mxu0 0.0
    %1415 = vmatpush2.xpose.msra.mxu0 0.0
    %1416 = vmatprep.subr.mxu0 0.0
    %1417 = vmatpush2.xpose.msra.mxu0 0.0
    %1418 = vmatprep.subr.mxu0 0.0
    %1419 = vmatpush2.xpose.msra.mxu0 0.0
    %1420 = vmatprep.subr.mxu0 0.0
    %1421 = vmatpush2.xpose.msra.mxu0 0.0
    %1422 = vmatprep.subr.mxu0 0.0
    %1423 = vmatpush2.xpose.msra.mxu0 0.0
    %1424 = vmatprep.subr.mxu0 0.0
    %1425 = vmatpush2.xpose.msra.mxu0 0.0
    %1426 = vmatprep.subr.mxu0 0.0
    %1427 = vmatpush2.xpose.msra.mxu0 0.0
    %1428 = vmatprep.subr.mxu0 0.0
    %1429 = vmatpush2.xpose.msra.mxu0 0.0
    %1430 = vmatprep.subr.mxu0 0.0
    %1431 = vmatpush2.xpose.msra.mxu0 0.0
    %1432 = vmatprep.subr.mxu0 0.0
    %1433 = vmatpush2.xpose.msra.mxu0 0.0
    %1434 = vmatprep.subr.mxu0 0.0
    %1435 = vmatpush2.xpose.msra.mxu0 0.0
    %1436 = vmatprep.subr.mxu0 0.0
    %1437 = vmatpush2.xpose.msra.mxu0 0.0
    %1438 = vmatprep.subr.mxu0 0.0
    %1439 = vmatpush2.xpose.msra.mxu0 0.0
    %1440 = vmatprep.subr.mxu0 0.0
    %1441 = vmatpush2.xpose.msra.mxu0 0.0
    %1442 = vmatprep.subr.mxu0 0.0
    %1443 = vmatpush2.xpose.msra.mxu0 0.0
    %1444 = vmatprep.mubr.f32.mxu0 0.0
    %1445 = vmatmul.mubr.f32.gmra.mxu0 %v1376
    %v1446 = vpop.f32.mrf.mxu0
    %v1447 = vadd.f32 0.0, %v1446
    %v1448 = vpop.f32.mrf.mxu0
    %1449 = vdwg.mxu0
    %1450 = vrot.lane.b32.xlu0 %v333, 104
    %v1451 = vpop.permute.xlu0 %1450
    %1452 = vrot.lane.b32.xlu0 %v333, 72
    %v1453 = vpop.permute.xlu0 %1452
    %v1454 = vsel %vm374, %v1451, 0
    %v1456 = vsel %vm374, %v1453, 0
    %1458 = vmatprep.subr.mxu0 0.0
    %1459 = vmatpush1.xpose.msra.mxu0 0.0
    %1460 = vmatprep.subr.mxu0 0.0
    %1461 = vmatpush1.xpose.msra.mxu0 0.0
    %1462 = vmatprep.subr.mxu0 0.0
    %1463 = vmatpush1.xpose.msra.mxu0 0.0
    %1464 = vmatprep.subr.mxu0 0.0
    %1465 = vmatpush1.xpose.msra.mxu0 0.0
    %1466 = vmatprep.subr.mxu0 0.0
    %1467 = vmatpush1.xpose.msra.mxu0 0.0
    %1468 = vmatprep.subr.mxu0 0.0
    %1469 = vmatpush1.xpose.msra.mxu0 0.0
    %1470 = vmatprep.subr.mxu0 0.0
    %1471 = vmatpush1.xpose.msra.mxu0 0.0
    %1472 = vmatprep.subr.mxu0 0.0
    %1473 = vmatpush1.xpose.msra.mxu0 0.0
    %1474 = vmatprep.subr.mxu0 0.0
    %1475 = vmatpush1.xpose.msra.mxu0 0.0
    %1476 = vmatprep.subr.mxu0 0.0
    %1477 = vmatpush1.xpose.msra.mxu0 0.0
    %1478 = vmatprep.subr.mxu0 0.0
    %1479 = vmatpush1.xpose.msra.mxu0 0.0
    %1480 = vmatprep.subr.mxu0 0.0
    %1481 = vmatpush1.xpose.msra.mxu0 0.0
    %1482 = vmatprep.subr.mxu0 0.0
    %1483 = vmatpush1.xpose.msra.mxu0 0.0
    %1484 = vmatprep.subr.mxu0 0.0
    %1485 = vmatpush1.xpose.msra.mxu0 0.0
    %1486 = vmatprep.subr.mxu0 0.0
    %1487 = vmatpush1.xpose.msra.mxu0 0.0
    %1488 = vmatprep.subr.mxu0 0.0
    %1489 = vmatpush1.xpose.msra.mxu0 %v1456
    %1490 = vmatprep.subr.mxu0 0.0
    %1491 = vmatpush2.xpose.msra.mxu0 0.0
    %1492 = vmatprep.subr.mxu0 0.0
    %1493 = vmatpush2.xpose.msra.mxu0 0.0
    %1494 = vmatprep.subr.mxu0 0.0
    %1495 = vmatpush2.xpose.msra.mxu0 0.0
    %1496 = vmatprep.subr.mxu0 0.0
    %1497 = vmatpush2.xpose.msra.mxu0 0.0
    %1498 = vmatprep.subr.mxu0 0.0
    %1499 = vmatpush2.xpose.msra.mxu0 0.0
    %1500 = vmatprep.subr.mxu0 0.0
    %1501 = vmatpush2.xpose.msra.mxu0 0.0
    %1502 = vmatprep.subr.mxu0 0.0
    %1503 = vmatpush2.xpose.msra.mxu0 0.0
    %1504 = vmatprep.subr.mxu0 0.0
    %1505 = vmatpush2.xpose.msra.mxu0 0.0
    %1506 = vmatprep.subr.mxu0 0.0
    %1507 = vmatpush2.xpose.msra.mxu0 0.0
    %1508 = vmatprep.subr.mxu0 0.0
    %1509 = vmatpush2.xpose.msra.mxu0 0.0
    %1510 = vmatprep.subr.mxu0 0.0
    %1511 = vmatpush2.xpose.msra.mxu0 0.0
    %1512 = vmatprep.subr.mxu0 0.0
    %1513 = vmatpush2.xpose.msra.mxu0 0.0
    %1514 = vmatprep.subr.mxu0 0.0
    %1515 = vmatpush2.xpose.msra.mxu0 0.0
    %1516 = vmatprep.subr.mxu0 0.0
    %1517 = vmatpush2.xpose.msra.mxu0 0.0
    %1518 = vmatprep.subr.mxu0 0.0
    %1519 = vmatpush2.xpose.msra.mxu0 0.0
    %1520 = vmatprep.subr.mxu0 0.0
    %1521 = vmatpush2.xpose.msra.mxu0 0.0
    %1522 = vmatprep.mubr.f32.mxu0 0.0
    %1523 = vmatmul.mubr.f32.gmra.mxu0 %v1454
    %v1524 = vpop.f32.mrf.mxu0
    %v1525 = vadd.f32 0.0, %v1524
    %v1526 = vpop.f32.mrf.mxu0
    %1527 = vdwg.mxu0
    %v1528 = vmul.f32 %v1447, 0.35355338
    %v1529 = vmul.f32 %v1525, 0.35355338
    %v1530 = vadd.f32 %v1528, %v364
    %v1531 = vadd.f32 %v1529, %v368
    %v1532 = vsel %vm374, %v1530, -inf
    %1533 = vmax.xlane.f32.xlu0 %v1532
    %v1534 = vpop.xlane.xlu0 %1533
    %v1535 = vsel %vm374, %v1531, -inf
    %1536 = vmax.xlane.f32.xlu0 %v1535
    %v1537 = vpop.xlane.xlu0 %1536
    %v1538 = vsub.f32 %v1530, %v1534
    %v1539 = vsub.f32 %v1531, %v1537
    %v1540 = vmul.f32 %v1538, 1.442695
    %v1541 = vpow.pop %v1540
    %v1542 = vmul.f32 %v1539, 1.442695
    %v1543 = vpow.pop %v1542
    %v1544 = vsel %vm374, %v1541, 0.0
    %1545 = vadd.xlane.f32.xlu0 %v1544
    %v1546 = vpop.xlane.xlu0 %1545
    %v1547 = vsel %vm374, %v1543, 0.0
    %1548 = vadd.xlane.f32.xlu0 %v1547
    %v1549 = vpop.xlane.xlu0 %1548
    %v1550 = vrcp.pop %v1546
    %v1551 = vrcp.pop %v1549
    %v1552 = vmul.f32 %v1541, %v1550
    %v1553 = vmul.f32 %v1543, %v1551
    %1554 = vrot.lane.b32.xlu0 %v328, 40
    %v1555 = vpop.permute.xlu0 %1554
    %v1558 = vsel %vm374, %v1552, 0
    %1560 = vmatprep.subr.mxu0 0.0
    %1561 = vmatpush1.msra.mxu0 0.0
    %1562 = vmatprep.subr.mxu0 0.0
    %1563 = vmatpush1.msra.mxu0 0.0
    %1564 = vmatprep.subr.mxu0 0.0
    %1565 = vmatpush1.msra.mxu0 0.0
    %1566 = vmatprep.subr.mxu0 0.0
    %1567 = vmatpush1.msra.mxu0 0.0
    %1568 = vmatprep.subr.mxu0 0.0
    %1569 = vmatpush1.msra.mxu0 0.0
    %1570 = vmatprep.subr.mxu0 0.0
    %1571 = vmatpush1.msra.mxu0 0.0
    %1572 = vmatprep.subr.mxu0 0.0
    %1573 = vmatpush1.msra.mxu0 0.0
    %1574 = vmatprep.subr.mxu0 0.0
    %1575 = vmatpush1.msra.mxu0 0.0
    %1576 = vmatprep.subr.mxu0 0.0
    %1577 = vmatpush1.msra.mxu0 0.0
    %1578 = vmatprep.subr.mxu0 0.0
    %1579 = vmatpush1.msra.mxu0 0.0
    %1580 = vmatprep.subr.mxu0 0.0
    %1581 = vmatpush1.msra.mxu0 0.0
    %1582 = vmatprep.subr.mxu0 0.0
    %1583 = vmatpush1.msra.mxu0 0.0
    %1584 = vmatprep.subr.mxu0 0.0
    %1585 = vmatpush1.msra.mxu0 0.0
    %1586 = vmatprep.subr.mxu0 0.0
    %1587 = vmatpush1.msra.mxu0 0.0
    %1588 = vmatprep.subr.mxu0 0.0
    %1589 = vmatpush1.msra.mxu0 0.0
    %1590 = vmatprep.subr.mxu0 0.0
    %1591 = vmatpush1.msra.mxu0 %v1555
    %1592 = vmatprep.subr.mxu0 0.0
    %1593 = vmatpush2.msra.mxu0 0.0
    %1594 = vmatprep.subr.mxu0 0.0
    %1595 = vmatpush2.msra.mxu0 0.0
    %1596 = vmatprep.subr.mxu0 0.0
    %1597 = vmatpush2.msra.mxu0 0.0
    %1598 = vmatprep.subr.mxu0 0.0
    %1599 = vmatpush2.msra.mxu0 0.0
    %1600 = vmatprep.subr.mxu0 0.0
    %1601 = vmatpush2.msra.mxu0 0.0
    %1602 = vmatprep.subr.mxu0 0.0
    %1603 = vmatpush2.msra.mxu0 0.0
    %1604 = vmatprep.subr.mxu0 0.0
    %1605 = vmatpush2.msra.mxu0 0.0
    %1606 = vmatprep.subr.mxu0 0.0
    %1607 = vmatpush2.msra.mxu0 0.0
    %1608 = vmatprep.subr.mxu0 0.0
    %1609 = vmatpush2.msra.mxu0 0.0
    %1610 = vmatprep.subr.mxu0 0.0
    %1611 = vmatpush2.msra.mxu0 0.0
    %1612 = vmatprep.subr.mxu0 0.0
    %1613 = vmatpush2.msra.mxu0 0.0
    %1614 = vmatprep.subr.mxu0 0.0
    %1615 = vmatpush2.msra.mxu0 0.0
    %1616 = vmatprep.subr.mxu0 0.0
    %1617 = vmatpush2.msra.mxu0 0.0
    %1618 = vmatprep.subr.mxu0 0.0
    %1619 = vmatpush2.msra.mxu0 0.0
    %1620 = vmatprep.subr.mxu0 0.0
    %1621 = vmatpush2.msra.mxu0 0.0
    %1622 = vmatprep.subr.mxu0 0.0
    %1623 = vmatpush2.msra.mxu0 0.0
    %1624 = vmatprep.mubr.f32.mxu0 0.0
    %1625 = vmatmul.mubr.f32.gmra.mxu0 %v1558
    %v1626 = vpop.f32.mrf.mxu0
    %v1627 = vadd.f32 0.0, %v1626
    %v1628 = vpop.f32.mrf.mxu0
    %1629 = vdwg.mxu0
    %1630 = vrot.lane.b32.xlu0 %v333, 40
    %v1631 = vpop.permute.xlu0 %1630
    %v1634 = vsel %vm374, %v1553, 0
    %1636 = vmatprep.subr.mxu0 0.0
    %1637 = vmatpush1.msra.mxu0 0.0
    %1638 = vmatprep.subr.mxu0 0.0
    %1639 = vmatpush1.msra.mxu0 0.0
    %1640 = vmatprep.subr.mxu0 0.0
    %1641 = vmatpush1.msra.mxu0 0.0
    %1642 = vmatprep.subr.mxu0 0.0
    %1643 = vmatpush1.msra.mxu0 0.0
    %1644 = vmatprep.subr.mxu0 0.0
    %1645 = vmatpush1.msra.mxu0 0.0
    %1646 = vmatprep.subr.mxu0 0.0
    %1647 = vmatpush1.msra.mxu0 0.0
    %1648 = vmatprep.subr.mxu0 0.0
    %1649 = vmatpush1.msra.mxu0 0.0
    %1650 = vmatprep.subr.mxu0 0.0
    %1651 = vmatpush1.msra.mxu0 0.0
    %1652 = vmatprep.subr.mxu0 0.0
    %1653 = vmatpush1.msra.mxu0 0.0
    %1654 = vmatprep.subr.mxu0 0.0
    %1655 = vmatpush1.msra.mxu0 0.0
    %1656 = vmatprep.subr.mxu0 0.0
    %1657 = vmatpush1.msra.mxu0 0.0
    %1658 = vmatprep.subr.mxu0 0.0
    %1659 = vmatpush1.msra.mxu0 0.0
    %1660 = vmatprep.subr.mxu0 0.0
    %1661 = vmatpush1.msra.mxu0 0.0
    %1662 = vmatprep.subr.mxu0 0.0
    %1663 = vmatpush1.msra.mxu0 0.0
    %1664 = vmatprep.subr.mxu0 0.0
    %1665 = vmatpush1.msra.mxu0 0.0
    %1666 = vmatprep.subr.mxu0 0.0
    %1667 = vmatpush1.msra.mxu0 %v1631
    %1668 = vmatprep.subr.mxu0 0.0
    %1669 = vmatpush2.msra.mxu0 0.0
    %1670 = vmatprep.subr.mxu0 0.0
    %1671 = vmatpush2.msra.mxu0 0.0
    %1672 = vmatprep.subr.mxu0 0.0
    %1673 = vmatpush2.msra.mxu0 0.0
    %1674 = vmatprep.subr.mxu0 0.0
    %1675 = vmatpush2.msra.mxu0 0.0
    %1676 = vmatprep.subr.mxu0 0.0
    %1677 = vmatpush2.msra.mxu0 0.0
    %1678 = vmatprep.subr.mxu0 0.0
    %1679 = vmatpush2.msra.mxu0 0.0
    %1680 = vmatprep.subr.mxu0 0.0
    %1681 = vmatpush2.msra.mxu0 0.0
    %1682 = vmatprep.subr.mxu0 0.0
    %1683 = vmatpush2.msra.mxu0 0.0
    %1684 = vmatprep.subr.mxu0 0.0
    %1685 = vmatpush2.msra.mxu0 0.0
    %1686 = vmatprep.subr.mxu0 0.0
    %1687 = vmatpush2.msra.mxu0 0.0
    %1688 = vmatprep.subr.mxu0 0.0
    %1689 = vmatpush2.msra.mxu0 0.0
    %1690 = vmatprep.subr.mxu0 0.0
    %1691 = vmatpush2.msra.mxu0 0.0
    %1692 = vmatprep.subr.mxu0 0.0
    %1693 = vmatpush2.msra.mxu0 0.0
    %1694 = vmatprep.subr.mxu0 0.0
    %1695 = vmatpush2.msra.mxu0 0.0
    %1696 = vmatprep.subr.mxu0 0.0
    %1697 = vmatpush2.msra.mxu0 0.0
    %1698 = vmatprep.subr.mxu0 0.0
    %1699 = vmatpush2.msra.mxu0 0.0
    %1700 = vmatprep.mubr.f32.mxu0 0.0
    %1701 = vmatmul.mubr.f32.gmra.mxu0 %v1634
    %v1702 = vpop.f32.mrf.mxu0
    %v1703 = vadd.f32 0.0, %v1702
    %v1704 = vpop.f32.mrf.mxu0
    %1705 = vdwg.mxu0
    %1708 = vrot.lane.b32.xlu0 %v959, 8
    %v1709 = vpop.permute.xlu0 %1708
    %1710 = vrot.lane.b32.xlu0 %v1035, 8
    %v1711 = vpop.permute.xlu0 %1710
    %1716 = vrot.lane.b32.xlu0 %v1293, 16
    %v1717 = vpop.permute.xlu0 %1716
    %1718 = vrot.lane.b32.xlu0 %v1369, 16
    %v1719 = vpop.permute.xlu0 %1718
    %1724 = vrot.lane.b32.xlu0 %v1627, 24
    %v1725 = vpop.permute.xlu0 %1724
    %1726 = vrot.lane.b32.xlu0 %v1703, 24
    %v1727 = vpop.permute.xlu0 %1726
    %v1730 = vsel %vm374, %v625, %v1709
    %v1731 = vsel %vm374, %v701, %v1711
    %vm1732 = vcmask 130048
    %v1733 = vsel %vm1732, %v1730, %v1717
    %v1734 = vsel %vm1732, %v1731, %v1719
    %vm1735 = vcmask 195584
    %v1736 = vsel %vm1735, %v1733, %v1725
    %v1737 = vsel %vm1735, %v1734, %v1727
    %v1738 = vlaneseq
    %v1739 = vshrl.u32 %v1738, 7
    %v1740 = vsub.s32 3, %v1739
    %v1741 = vrot.slane %v63, %v1740
    %1746 = vrot.lane.b32.xlu0 %v47, 32
    %v1747 = vpop.permute.xlu0 %1746
    %1748 = vrot.lane.b32.xlu0 %v50, 32
    %v1749 = vpop.permute.xlu0 %1748
    %1750 = vrot.lane.b32.xlu0 %v53, 32
    %v1751 = vpop.permute.xlu0 %1750
    %1752 = vrot.lane.b32.xlu0 %v56, 32
    %v1753 = vpop.permute.xlu0 %1752
    %v1759 = vsel %vm211, %v1736, 0
    %v1762 = vsel %vm211, %v1737, 0
    %1764 = vmatprep.subr.mxu0 0.0
    %1765 = vmatpush1.msra.mxu0 0.0
    %1766 = vmatprep.subr.mxu0 0.0
    %1767 = vmatpush1.msra.mxu0 0.0
    %1768 = vmatprep.subr.mxu0 0.0
    %1769 = vmatpush1.msra.mxu0 0.0
    %1770 = vmatprep.subr.mxu0 0.0
    %1771 = vmatpush1.msra.mxu0 0.0
    %1772 = vmatprep.subr.mxu0 0.0
    %1773 = vmatpush1.msra.mxu0 0.0
    %1774 = vmatprep.subr.mxu0 0.0
    %1775 = vmatpush1.msra.mxu0 0.0
    %1776 = vmatprep.subr.mxu0 0.0
    %1777 = vmatpush1.msra.mxu0 0.0
    %1778 = vmatprep.subr.mxu0 0.0
    %1779 = vmatpush1.msra.mxu0 0.0
    %1780 = vmatprep.subr.mxu0 0.0
    %1781 = vmatpush1.msra.mxu0 0.0
    %1782 = vmatprep.subr.mxu0 0.0
    %1783 = vmatpush1.msra.mxu0 0.0
    %1784 = vmatprep.subr.mxu0 0.0
    %1785 = vmatpush1.msra.mxu0 0.0
    %1786 = vmatprep.subr.mxu0 0.0
    %1787 = vmatpush1.msra.mxu0 0.0
    %1788 = vmatprep.subr.mxu0 0.0
    %1789 = vmatpush1.msra.mxu0 %v1753
    %1790 = vmatprep.subr.mxu0 0.0
    %1791 = vmatpush1.msra.mxu0 %v1751
    %1792 = vmatprep.subr.mxu0 0.0
    %1793 = vmatpush1.msra.mxu0 %v1749
    %1794 = vmatprep.subr.mxu0 0.0
    %1795 = vmatpush1.msra.mxu0 %v1747
    %1796 = vmatprep.subr.mxu0 0.0
    %1797 = vmatpush2.msra.mxu0 0.0
    %1798 = vmatprep.subr.mxu0 0.0
    %1799 = vmatpush2.msra.mxu0 0.0
    %1800 = vmatprep.subr.mxu0 0.0
    %1801 = vmatpush2.msra.mxu0 0.0
    %1802 = vmatprep.subr.mxu0 0.0
    %1803 = vmatpush2.msra.mxu0 0.0
    %1804 = vmatprep.subr.mxu0 0.0
    %1805 = vmatpush2.msra.mxu0 0.0
    %1806 = vmatprep.subr.mxu0 0.0
    %1807 = vmatpush2.msra.mxu0 0.0
    %1808 = vmatprep.subr.mxu0 0.0
    %1809 = vmatpush2.msra.mxu0 0.0
    %1810 = vmatprep.subr.mxu0 0.0
    %1811 = vmatpush2.msra.mxu0 0.0
    %1812 = vmatprep.subr.mxu0 0.0
    %1813 = vmatpush2.msra.mxu0 0.0
    %1814 = vmatprep.subr.mxu0 0.0
    %1815 = vmatpush2.msra.mxu0 0.0
    %1816 = vmatprep.subr.mxu0 0.0
    %1817 = vmatpush2.msra.mxu0 0.0
    %1818 = vmatprep.subr.mxu0 0.0
    %1819 = vmatpush2.msra.mxu0 0.0
    %1820 = vmatprep.subr.mxu0 0.0
    %1821 = vmatpush2.msra.mxu0 0.0
    %1822 = vmatprep.subr.mxu0 0.0
    %1823 = vmatpush2.msra.mxu0 0.0
    %1824 = vmatprep.subr.mxu0 0.0
    %1825 = vmatpush2.msra.mxu0 0.0
    %1826 = vmatprep.subr.mxu0 0.0
    %1827 = vmatpush2.msra.mxu0 0.0
    %1828 = vmatprep.mubr.f32.mxu0 0.0
    %1829 = vmatmul.mubr.f32.gmra.mxu0 %v1759
    %v1830 = vpop.f32.mrf.mxu0
    %v1831 = vadd.f32 %v1741, %v1830
    %v1832 = vpop.f32.mrf.mxu0
    %1833 = vmatprep.mubr.f32.mxu0 0.0
    %1834 = vmatmul.mubr.f32.gmra.mxu0 %v1762
    %v1835 = vpop.f32.mrf.mxu0
    %v1836 = vadd.f32 %v1741, %v1835
    %v1837 = vpop.f32.mrf.mxu0
    %1838 = vdwg.mxu0
    %v1839 = vadd.f32 %v249, %v1831
    %v1840 = vadd.f32 %v250, %v1836
    %v1841 = vsel %vm211, %v1839, 0.0
    %1842 = vadd.xlane.f32.xlu0 %v1841
    %v1843 = vpop.xlane.xlu0 %1842
    %v1844 = vsel %vm211, %v1840, 0.0
    %1845 = vadd.xlane.f32.xlu0 %v1844
    %v1846 = vpop.xlane.xlu0 %1845
    %v1847 = vmul.f32 %v1843, %v218
    %v1848 = vmul.f32 %v1846, %v218
    %v1849 = vsub.f32 %v1839, %v1847
    %v1850 = vsub.f32 %v1840, %v1848
    %v1851 = vmul.f32 %v1849, %v1849
    %v1852 = vmul.f32 %v1850, %v1850
    %v1853 = vsel %vm211, %v1851, 0.0
    %1854 = vadd.xlane.f32.xlu0 %v1853
    %v1855 = vpop.xlane.xlu0 %1854
    %v1856 = vsel %vm211, %v1852, 0.0
    %1857 = vadd.xlane.f32.xlu0 %v1856
    %v1858 = vpop.xlane.xlu0 %1857
    %v1859 = vmul.f32 %v1855, %v218
    %v1860 = vmul.f32 %v1858, %v218
    %v1861 = vadd.f32 %v1859, 1e-12
    %v1862 = vadd.f32 %v1860, 1e-12
    %v1863 = vrsqrt.pop %v1861
    %v1864 = vrsqrt.pop %v1862
    %v1865 = vmul.f32 %v1849, %v1863
    %v1866 = vmul.f32 %v1850, %v1864
    %v1867 = vlaneseq
    %v1868 = vshrl.u32 %v1867, 7
    %v1869 = vsub.s32 4, %v1868
    %v1870 = vrot.slane %v63, %v1869
    %v1871 = vmul.f32 %v1865, %v1870
    %v1872 = vmul.f32 %v1866, %v1870
    %v1873 = vlaneseq
    %v1874 = vshrl.u32 %v1873, 7
    %v1875 = vsub.s32 5, %v1874
    %v1876 = vrot.slane %v63, %v1875
    %v1877 = vadd.f32 %v1871, %v1876
    %v1878 = vadd.f32 %v1872, %v1876
    %v1879 = vlaneseq
    %v1880 = vshrl.u32 %v1879, 7
    %v1881 = vsub.s32 6, %v1880
    %v1882 = vrot.slane %v63, %v1881
    %v1884 = vsel %vm211, %v1877, 0
    %v1887 = vsel %vm211, %v1878, 0
    %1889 = vmatprep.subr.mxu0 0.0
    %1890 = vmatpush1.msra.mxu0 0.0
    %1891 = vmatprep.subr.mxu0 0.0
    %1892 = vmatpush1.msra.mxu0 0.0
    %1893 = vmatprep.subr.mxu0 0.0
    %1894 = vmatpush1.msra.mxu0 0.0
    %1895 = vmatprep.subr.mxu0 0.0
    %1896 = vmatpush1.msra.mxu0 0.0
    %1897 = vmatprep.subr.mxu0 0.0
    %1898 = vmatpush1.msra.mxu0 0.0
    %1899 = vmatprep.subr.mxu0 0.0
    %1900 = vmatpush1.msra.mxu0 0.0
    %1901 = vmatprep.subr.mxu0 0.0
    %1902 = vmatpush1.msra.mxu0 0.0
    %1903 = vmatprep.subr.mxu0 0.0
    %1904 = vmatpush1.msra.mxu0 0.0
    %1905 = vmatprep.subr.mxu0 0.0
    %1906 = vmatpush1.msra.mxu0 0.0
    %1907 = vmatprep.subr.mxu0 0.0
    %1908 = vmatpush1.msra.mxu0 0.0
    %1909 = vmatprep.subr.mxu0 0.0
    %1910 = vmatpush1.msra.mxu0 0.0
    %1911 = vmatprep.subr.mxu0 0.0
    %1912 = vmatpush1.msra.mxu0 0.0
    %1913 = vmatprep.subr.mxu0 0.0
    %1914 = vmatpush1.msra.mxu0 %v57
    %1915 = vmatprep.subr.mxu0 0.0
    %1916 = vmatpush1.msra.mxu0 %v54
    %1917 = vmatprep.subr.mxu0 0.0
    %1918 = vmatpush1.msra.mxu0 %v51
    %1919 = vmatprep.subr.mxu0 0.0
    %1920 = vmatpush1.msra.mxu0 %v48
    %1921 = vmatprep.subr.mxu0 0.0
    %1922 = vmatpush2.msra.mxu0 0.0
    %1923 = vmatprep.subr.mxu0 0.0
    %1924 = vmatpush2.msra.mxu0 0.0
    %1925 = vmatprep.subr.mxu0 0.0
    %1926 = vmatpush2.msra.mxu0 0.0
    %1927 = vmatprep.subr.mxu0 0.0
    %1928 = vmatpush2.msra.mxu0 0.0
    %1929 = vmatprep.subr.mxu0 0.0
    %1930 = vmatpush2.msra.mxu0 0.0
    %1931 = vmatprep.subr.mxu0 0.0
    %1932 = vmatpush2.msra.mxu0 0.0
    %1933 = vmatprep.subr.mxu0 0.0
    %1934 = vmatpush2.msra.mxu0 0.0
    %1935 = vmatprep.subr.mxu0 0.0
    %1936 = vmatpush2.msra.mxu0 0.0
    %1937 = vmatprep.subr.mxu0 0.0
    %1938 = vmatpush2.msra.mxu0 0.0
    %1939 = vmatprep.subr.mxu0 0.0
    %1940 = vmatpush2.msra.mxu0 0.0
    %1941 = vmatprep.subr.mxu0 0.0
    %1942 = vmatpush2.msra.mxu0 0.0
    %1943 = vmatprep.subr.mxu0 0.0
    %1944 = vmatpush2.msra.mxu0 0.0
    %1945 = vmatprep.subr.mxu0 0.0
    %1946 = vmatpush2.msra.mxu0 0.0
    %1947 = vmatprep.subr.mxu0 0.0
    %1948 = vmatpush2.msra.mxu0 0.0
    %1949 = vmatprep.subr.mxu0 0.0
    %1950 = vmatpush2.msra.mxu0 0.0
    %1951 = vmatprep.subr.mxu0 0.0
    %1952 = vmatpush2.msra.mxu0 0.0
    %1953 = vmatprep.mubr.f32.mxu0 0.0
    %1954 = vmatmul.mubr.f32.gmra.mxu0 %v1884
    %v1955 = vpop.f32.mrf.mxu0
    %v1956 = vadd.f32 %v1882, %v1955
    %v1957 = vpop.f32.mrf.mxu0
    %1958 = vmatprep.mubr.f32.mxu0 0.0
    %1959 = vmatmul.mubr.f32.gmra.mxu0 %v1887
    %v1960 = vpop.f32.mrf.mxu0
    %v1961 = vadd.f32 %v1882, %v1960
    %v1962 = vpop.f32.mrf.mxu0
    %1963 = vdwg.mxu0
    %v1964 = vmul.f32 %v1956, 0.5
    %v1965 = vmul.f32 %v1961, 0.5
    %v1966 = vmul.f32 %v1956, 0.044715
    %v1967 = vmul.f32 %v1961, 0.044715
    %v1968 = vmul.f32 %v1966, %v1956
    %v1969 = vmul.f32 %v1967, %v1961
    %v1970 = vmul.f32 %v1968, %v1956
    %v1971 = vmul.f32 %v1969, %v1961
    %v1972 = vadd.f32 %v1956, %v1970
    %v1973 = vadd.f32 %v1961, %v1971
    %v1974 = vmul.f32 %v1972, 0.7978846
    %v1975 = vmul.f32 %v1973, 0.7978846
    %v1976 = vtanh.pop %v1974
    %v1977 = vtanh.pop %v1975
    %v1978 = vadd.f32 %v1976, 1.0
    %v1979 = vadd.f32 %v1977, 1.0
    %v1980 = vmul.f32 %v1964, %v1978
    %v1981 = vmul.f32 %v1965, %v1979
    %v1982 = vlaneseq
    %v1983 = vshrl.u32 %v1982, 7
    %v1984 = vsub.s32 7, %v1983
    %v1985 = vrot.slane %v63, %v1984
    %1994 = vrot.lane.b32.xlu0 %v48, 64
    %v1995 = vpop.permute.xlu0 %1994
    %1996 = vrot.lane.b32.xlu0 %v51, 64
    %v1997 = vpop.permute.xlu0 %1996
    %1998 = vrot.lane.b32.xlu0 %v54, 64
    %v1999 = vpop.permute.xlu0 %1998
    %2000 = vrot.lane.b32.xlu0 %v57, 64
    %v2001 = vpop.permute.xlu0 %2000
    %2002 = vrot.lane.b32.xlu0 %v59, 64
    %v2003 = vpop.permute.xlu0 %2002
    %2004 = vrot.lane.b32.xlu0 %v60, 64
    %v2005 = vpop.permute.xlu0 %2004
    %2006 = vrot.lane.b32.xlu0 %v61, 64
    %v2007 = vpop.permute.xlu0 %2006
    %2008 = vrot.lane.b32.xlu0 %v62, 64
    %v2009 = vpop.permute.xlu0 %2008
    %vm2018 = vcmask 523264
    %v2020 = vsel %vm2018, %v1980, 0
    %v2023 = vsel %vm2018, %v1981, 0
    %2025 = vmatprep.subr.mxu0 0.0
    %2026 = vmatpush1.msra.mxu0 0.0
    %2027 = vmatprep.subr.mxu0 0.0
    %2028 = vmatpush1.msra.mxu0 0.0
    %2029 = vmatprep.subr.mxu0 0.0
    %2030 = vmatpush1.msra.mxu0 0.0
    %2031 = vmatprep.subr.mxu0 0.0
    %2032 = vmatpush1.msra.mxu0 0.0
    %2033 = vmatprep.subr.mxu0 0.0
    %2034 = vmatpush1.msra.mxu0 0.0
    %2035 = vmatprep.subr.mxu0 0.0
    %2036 = vmatpush1.msra.mxu0 0.0
    %2037 = vmatprep.subr.mxu0 0.0
    %2038 = vmatpush1.msra.mxu0 0.0
    %2039 = vmatprep.subr.mxu0 0.0
    %2040 = vmatpush1.msra.mxu0 0.0
    %2041 = vmatprep.subr.mxu0 0.0
    %2042 = vmatpush1.msra.mxu0 %v2009
    %2043 = vmatprep.subr.mxu0 0.0
    %2044 = vmatpush1.msra.mxu0 %v2007
    %2045 = vmatprep.subr.mxu0 0.0
    %2046 = vmatpush1.msra.mxu0 %v2005
    %2047 = vmatprep.subr.mxu0 0.0
    %2048 = vmatpush1.msra.mxu0 %v2003
    %2049 = vmatprep.subr.mxu0 0.0
    %2050 = vmatpush1.msra.mxu0 %v2001
    %2051 = vmatprep.subr.mxu0 0.0
    %2052 = vmatpush1.msra.mxu0 %v1999
    %2053 = vmatprep.subr.mxu0 0.0
    %2054 = vmatpush1.msra.mxu0 %v1997
    %2055 = vmatprep.subr.mxu0 0.0
    %2056 = vmatpush1.msra.mxu0 %v1995
    %2057 = vmatprep.subr.mxu0 0.0
    %2058 = vmatpush2.msra.mxu0 0.0
    %2059 = vmatprep.subr.mxu0 0.0
    %2060 = vmatpush2.msra.mxu0 0.0
    %2061 = vmatprep.subr.mxu0 0.0
    %2062 = vmatpush2.msra.mxu0 0.0
    %2063 = vmatprep.subr.mxu0 0.0
    %2064 = vmatpush2.msra.mxu0 0.0
    %2065 = vmatprep.subr.mxu0 0.0
    %2066 = vmatpush2.msra.mxu0 0.0
    %2067 = vmatprep.subr.mxu0 0.0
    %2068 = vmatpush2.msra.mxu0 0.0
    %2069 = vmatprep.subr.mxu0 0.0
    %2070 = vmatpush2.msra.mxu0 0.0
    %2071 = vmatprep.subr.mxu0 0.0
    %2072 = vmatpush2.msra.mxu0 0.0
    %2073 = vmatprep.subr.mxu0 0.0
    %2074 = vmatpush2.msra.mxu0 0.0
    %2075 = vmatprep.subr.mxu0 0.0
    %2076 = vmatpush2.msra.mxu0 0.0
    %2077 = vmatprep.subr.mxu0 0.0
    %2078 = vmatpush2.msra.mxu0 0.0
    %2079 = vmatprep.subr.mxu0 0.0
    %2080 = vmatpush2.msra.mxu0 0.0
    %2081 = vmatprep.subr.mxu0 0.0
    %2082 = vmatpush2.msra.mxu0 0.0
    %2083 = vmatprep.subr.mxu0 0.0
    %2084 = vmatpush2.msra.mxu0 0.0
    %2085 = vmatprep.subr.mxu0 0.0
    %2086 = vmatpush2.msra.mxu0 0.0
    %2087 = vmatprep.subr.mxu0 0.0
    %2088 = vmatpush2.msra.mxu0 0.0
    %2089 = vmatprep.mubr.f32.mxu0 0.0
    %2090 = vmatmul.mubr.f32.gmra.mxu0 %v2020
    %v2091 = vpop.f32.mrf.mxu0
    %v2092 = vadd.f32 %v1985, %v2091
    %v2093 = vpop.f32.mrf.mxu0
    %2094 = vmatprep.mubr.f32.mxu0 0.0
    %2095 = vmatmul.mubr.f32.gmra.mxu0 %v2023
    %v2096 = vpop.f32.mrf.mxu0
    %v2097 = vadd.f32 %v1985, %v2096
    %v2098 = vpop.f32.mrf.mxu0
    %2099 = vdwg.mxu0
    %v2100 = vadd.f32 %v1877, %v2092
    %v2101 = vadd.f32 %v1878, %v2097
    %v2102 = vsel %vm211, %v2100, 0.0
    %2103 = vadd.xlane.f32.xlu0 %v2102
    %v2104 = vpop.xlane.xlu0 %2103
    %v2105 = vsel %vm211, %v2101, 0.0
    %2106 = vadd.xlane.f32.xlu0 %v2105
    %v2107 = vpop.xlane.xlu0 %2106
    %v2108 = vmul.f32 %v2104, %v218
    %v2109 = vmul.f32 %v2107, %v218
    %v2110 = vsub.f32 %v2100, %v2108
    %v2111 = vsub.f32 %v2101, %v2109
    %v2112 = vmul.f32 %v2110, %v2110
    %v2113 = vmul.f32 %v2111, %v2111
    %v2114 = vsel %vm211, %v2112, 0.0
    %2115 = vadd.xlane.f32.xlu0 %v2114
    %v2116 = vpop.xlane.xlu0 %2115
    %v2117 = vsel %vm211, %v2113, 0.0
    %2118 = vadd.xlane.f32.xlu0 %v2117
    %v2119 = vpop.xlane.xlu0 %2118
    %v2120 = vmul.f32 %v2116, %v218
    %v2121 = vmul.f32 %v2119, %v218
    %v2122 = vadd.f32 %v2120, 1e-12
    %v2123 = vadd.f32 %v2121, 1e-12
    %v2124 = vrsqrt.pop %v2122
    %v2125 = vrsqrt.pop %v2123
    %v2126 = vmul.f32 %v2110, %v2124
    %v2127 = vmul.f32 %v2111, %v2125
    %v2128 = vlaneseq
    %v2129 = vshrl.u32 %v2128, 7
    %v2130 = vsub.s32 0, %v2129
    %v2131 = vrot.slane %v64, %v2130
    %v2132 = vmul.f32 %v2126, %v2131
    %v2133 = vmul.f32 %v2127, %v2131
    %v2134 = vlaneseq
    %v2135 = vshrl.u32 %v2134, 7
    %v2136 = vsub.s32 1, %v2135
    %v2137 = vrot.slane %v64, %v2136
    %v2138 = vadd.f32 %v2132, %v2137
    %v2139 = vadd.f32 %v2133, %v2137
    %v2140 = vlaneseq
    %v2141 = vshrl.u32 %v2140, 7
    %v2142 = vsub.s32 2, %v2141
    %v2143 = vrot.slane %v64, %v2142
    %v2146 = vrot.slane %v2139, 7
    %vm2147 = vcmask 1041409
    %v2148 = vsel %vm2147, %v2146, %v2138
    %2149 = vrot.lane.b32.xlu0 %v48, 32
    %v2150 = vpop.permute.xlu0 %2149
    %2151 = vrot.lane.b32.xlu0 %v51, 32
    %v2152 = vpop.permute.xlu0 %2151
    %2153 = vrot.lane.b32.xlu0 %v54, 32
    %v2154 = vpop.permute.xlu0 %2153
    %2155 = vrot.lane.b32.xlu0 %v57, 32
    %v2156 = vpop.permute.xlu0 %2155
    %v2161 = vsel %vm211, %v2148, 0
    %2163 = vmatprep.subr.mxu0 0.0
    %2164 = vmatpush1.msra.mxu0 0.0
    %2165 = vmatprep.subr.mxu0 0.0
    %2166 = vmatpush1.msra.mxu0 0.0
    %2167 = vmatprep.subr.mxu0 0.0
    %2168 = vmatpush1.msra.mxu0 0.0
    %2169 = vmatprep.subr.mxu0 0.0
    %2170 = vmatpush1.msra.mxu0 0.0
    %2171 = vmatprep.subr.mxu0 0.0
    %2172 = vmatpush1.msra.mxu0 0.0
    %2173 = vmatprep.subr.mxu0 0.0
    %2174 = vmatpush1.msra.mxu0 0.0
    %2175 = vmatprep.subr.mxu0 0.0
    %2176 = vmatpush1.msra.mxu0 0.0
    %2177 = vmatprep.subr.mxu0 0.0
    %2178 = vmatpush1.msra.mxu0 0.0
    %2179 = vmatprep.subr.mxu0 0.0
    %2180 = vmatpush1.msra.mxu0 0.0
    %2181 = vmatprep.subr.mxu0 0.0
    %2182 = vmatpush1.msra.mxu0 0.0
    %2183 = vmatprep.subr.mxu0 0.0
    %2184 = vmatpush1.msra.mxu0 0.0
    %2185 = vmatprep.subr.mxu0 0.0
    %2186 = vmatpush1.msra.mxu0 0.0
    %2187 = vmatprep.subr.mxu0 0.0
    %2188 = vmatpush1.msra.mxu0 %v2156
    %2189 = vmatprep.subr.mxu0 0.0
    %2190 = vmatpush1.msra.mxu0 %v2154
    %2191 = vmatprep.subr.mxu0 0.0
    %2192 = vmatpush1.msra.mxu0 %v2152
    %2193 = vmatprep.subr.mxu0 0.0
    %2194 = vmatpush1.msra.mxu0 %v2150
    %2195 = vmatprep.subr.mxu0 0.0
    %2196 = vmatpush2.msra.mxu0 0.0
    %2197 = vmatprep.subr.mxu0 0.0
    %2198 = vmatpush2.msra.mxu0 0.0
    %2199 = vmatprep.subr.mxu0 0.0
    %2200 = vmatpush2.msra.mxu0 0.0
    %2201 = vmatprep.subr.mxu0 0.0
    %2202 = vmatpush2.msra.mxu0 0.0
    %2203 = vmatprep.subr.mxu0 0.0
    %2204 = vmatpush2.msra.mxu0 0.0
    %2205 = vmatprep.subr.mxu0 0.0
    %2206 = vmatpush2.msra.mxu0 0.0
    %2207 = vmatprep.subr.mxu0 0.0
    %2208 = vmatpush2.msra.mxu0 0.0
    %2209 = vmatprep.subr.mxu0 0.0
    %2210 = vmatpush2.msra.mxu0 0.0
    %2211 = vmatprep.subr.mxu0 0.0
    %2212 = vmatpush2.msra.mxu0 0.0
    %2213 = vmatprep.subr.mxu0 0.0
    %2214 = vmatpush2.msra.mxu0 0.0
    %2215 = vmatprep.subr.mxu0 0.0
    %2216 = vmatpush2.msra.mxu0 0.0
    %2217 = vmatprep.subr.mxu0 0.0
    %2218 = vmatpush2.msra.mxu0 0.0
    %2219 = vmatprep.subr.mxu0 0.0
    %2220 = vmatpush2.msra.mxu0 0.0
    %2221 = vmatprep.subr.mxu0 0.0
    %2222 = vmatpush2.msra.mxu0 0.0
    %2223 = vmatprep.subr.mxu0 0.0
    %2224 = vmatpush2.msra.mxu0 0.0
    %2225 = vmatprep.subr.mxu0 0.0
    %2226 = vmatpush2.msra.mxu0 0.0
    %2227 = vmatprep.mubr.f32.mxu0 0.0
    %2228 = vmatmul.mubr.f32.gmra.mxu0 %v2161
    %v2229 = vpop.f32.mrf.mxu0
    %v2230 = vadd.f32 %v2143, %v2229
    %v2231 = vpop.f32.mrf.mxu0
    %2232 = vdwg.mxu0
    %v2233 = vtanh.pop %v2230
    %v2234 = vlaneseq
    %v2235 = vshrl.u32 %v2234, 7
    %v2236 = vsub.s32 3, %v2235
    %v2237 = vrot.slane %v64, %v2236
    %v2239 = vsel %vm211, %v2233, 0
    %2241 = vmatprep.subr.mxu0 0.0
    %2242 = vmatpush1.msra.mxu0 0.0
    %2243 = vmatprep.subr.mxu0 0.0
    %2244 = vmatpush1.msra.mxu0 0.0
    %2245 = vmatprep.subr.mxu0 0.0
    %2246 = vmatpush1.msra.mxu0 0.0
    %2247 = vmatprep.subr.mxu0 0.0
    %2248 = vmatpush1.msra.mxu0 0.0
    %2249 = vmatprep.subr.mxu0 0.0
    %2250 = vmatpush1.msra.mxu0 0.0
    %2251 = vmatprep.subr.mxu0 0.0
    %2252 = vmatpush1.msra.mxu0 0.0
    %2253 = vmatprep.subr.mxu0 0.0
    %2254 = vmatpush1.msra.mxu0 0.0
    %2255 = vmatprep.subr.mxu0 0.0
    %2256 = vmatpush1.msra.mxu0 0.0
    %2257 = vmatprep.subr.mxu0 0.0
    %2258 = vmatpush1.msra.mxu0 0.0
    %2259 = vmatprep.subr.mxu0 0.0
    %2260 = vmatpush1.msra.mxu0 0.0
    %2261 = vmatprep.subr.mxu0 0.0
    %2262 = vmatpush1.msra.mxu0 0.0
    %2263 = vmatprep.subr.mxu0 0.0
    %2264 = vmatpush1.msra.mxu0 0.0
    %2265 = vmatprep.subr.mxu0 0.0
    %2266 = vmatpush1.msra.mxu0 %v58
    %2267 = vmatprep.subr.mxu0 0.0
    %2268 = vmatpush1.msra.mxu0 %v55
    %2269 = vmatprep.subr.mxu0 0.0
    %2270 = vmatpush1.msra.mxu0 %v52
    %2271 = vmatprep.subr.mxu0 0.0
    %2272 = vmatpush1.msra.mxu0 %v49
    %2273 = vmatprep.subr.mxu0 0.0
    %2274 = vmatpush2.msra.mxu0 0.0
    %2275 = vmatprep.subr.mxu0 0.0
    %2276 = vmatpush2.msra.mxu0 0.0
    %2277 = vmatprep.subr.mxu0 0.0
    %2278 = vmatpush2.msra.mxu0 0.0
    %2279 = vmatprep.subr.mxu0 0.0
    %2280 = vmatpush2.msra.mxu0 0.0
    %2281 = vmatprep.subr.mxu0 0.0
    %2282 = vmatpush2.msra.mxu0 0.0
    %2283 = vmatprep.subr.mxu0 0.0
    %2284 = vmatpush2.msra.mxu0 0.0
    %2285 = vmatprep.subr.mxu0 0.0
    %2286 = vmatpush2.msra.mxu0 0.0
    %2287 = vmatprep.subr.mxu0 0.0
    %2288 = vmatpush2.msra.mxu0 0.0
    %2289 = vmatprep.subr.mxu0 0.0
    %2290 = vmatpush2.msra.mxu0 0.0
    %2291 = vmatprep.subr.mxu0 0.0
    %2292 = vmatpush2.msra.mxu0 0.0
    %2293 = vmatprep.subr.mxu0 0.0
    %2294 = vmatpush2.msra.mxu0 0.0
    %2295 = vmatprep.subr.mxu0 0.0
    %2296 = vmatpush2.msra.mxu0 0.0
    %2297 = vmatprep.subr.mxu0 0.0
    %2298 = vmatpush2.msra.mxu0 0.0
    %2299 = vmatprep.subr.mxu0 0.0
    %2300 = vmatpush2.msra.mxu0 0.0
    %2301 = vmatprep.subr.mxu0 0.0
    %2302 = vmatpush2.msra.mxu0 0.0
    %2303 = vmatprep.subr.mxu0 0.0
    %2304 = vmatpush2.msra.mxu0 0.0
    %2305 = vmatprep.mubr.f32.mxu0 0.0
    %2306 = vmatmul.mubr.f32.gmra.mxu0 %v2239
    %v2307 = vpop.f32.mrf.mxu0
    %v2308 = vadd.f32 %v2237, %v2307
    %v2309 = vpop.f32.mrf.mxu0
    %2310 = vdwg.mxu0
    %2311 = vst [vmem:[#allocation5] sm:$0x3] %v2308
    // Predicated region
    $region26: #{simplified_improved_model.1} parent=1 // pred_check
      _
    $region27: #{simplified_improved_model.1} parent=1 // pred_check_branch
      %2313 = sbr.rel (0) target = $region29
    $region28: #{simplified_improved_model.1} parent=1 // pred_region
      %s2315 = ssub.s32 32, 32
      %2316 = vsyncadd [#allocation4], %s2315
      %s2318 = sshll.u32 [#allocation5], 4
      %s2319 = int_to_ptr.vmem [resolvable:$true] %s2318
      %2321 = dma.vmem_to_hbm [thread:$0]  %s2319, 32, %s5, [#allocation4]
    $region29: #{simplified_improved_model.1} parent=1 // pred_fallthru
      _
    // Predicated region
    $region30: #{simplified_improved_model.1} parent=1 // pred_check
      _
    $region31: #{simplified_improved_model.1} parent=1 // pred_check_branch
      %2323 = sbr.rel (0) target = $region33
    $region32: #{simplified_improved_model.1} parent=1 // pred_region
      %2324 = dma.done [#allocation4], 32
    $region33: #{simplified_improved_model.1} parent=1 // pred_fallthru
      _
    %2325 = vsyncpa [#allocation3], 1
    %2326 = vsyncpa [#allocation4], 1

</llo_original>
